<compile_context>
chip_gen: v5e
topology: v5e:2x2
jax: 0.10.0
libtpu: 0.0.40
codegen_flags: <defaults>
</compile_context>

<pallas_src>
import functools

import jax
import jax.numpy as jnp
from jax.experimental import pallas as pl
from jax.experimental.pallas import tpu as pltpu


_HIDDEN_PAD = 8      # padded hidden size (sublane multiple); layout assumes hidden <= 8
_B_TILE = 8          # sequences per grid block (sublane packing)


def _tree_sum(vals):
    """Pairwise (log-depth) sum of a list of arrays — keeps the serial chain short."""
    vals = list(vals)
    while len(vals) > 1:
        nxt = [vals[i] + vals[i + 1] for i in range(0, len(vals) - 1, 2)]
        if len(vals) % 2:
            nxt.append(vals[-1])
        vals = nxt
    return vals[0]


def _lstm_kernel(*refs, hidden, input_size, seq_len, w_eff, x_packed):
    f32 = jnp.float32
    H = _HIDDEN_PAD
    G = 4 * H                                   # padded gate width, gate order (i, f, g, o)
    L = seq_len * input_size

    if x_packed:
        p_ref, out_ref = refs
    else:
        p_ref, x_ref, out_ref = refs
    B = out_ref.shape[0]                        # sequences handled by this invocation

    # ---- unpack the packed (8,128) parameter tile (a single input DMA) -------------
    whh_t = p_ref[0:H, 0:G]                     # (H, G)   W_hh^T, zero-padded
    wih_t = p_ref[0:input_size, G:2 * G]        # (in, G)  W_ih^T, zero-padded
    bias = p_ref[0:1, 2 * G:3 * G]              # (1, G)   b_ih + b_hh
    wlin = p_ref[1:2, 2 * G:2 * G + H]          # (1, H)   linear head weights
    blin = p_ref[2:3, 2 * G:2 * G + 1]          # (1, 1)   linear head bias
    if x_packed:
        x = p_ref[0:B, 3 * G:3 * G + L]         # (B, L)   inputs folded into the tile
    else:
        x = x_ref[...]                          # (B, L)   lane-dense separate input

    # ---- loop-invariant broadcasts, hoisted (JAX does not CSE broadcast_in_dim) ----
    whh_rows = [jnp.broadcast_to(whh_t[k:k + 1, :], (B, G)) for k in range(hidden)]
    wih_rows = [jnp.broadcast_to(wih_t[k:k + 1, :], (B, G)) for k in range(input_size)]
    bias_b = jnp.broadcast_to(bias, (B, G))
    wlin_b = jnp.broadcast_to(wlin, (B, H))
    # one-hot lane masks used to assemble the output row in registers (no VMEM scratch)
    lane = jax.lax.broadcasted_iota(jnp.int32, (1, w_eff), 1)
    onehot = [(lane == j).astype(f32) for j in range(w_eff)]

    h = jnp.zeros((B, H), f32)                  # batch on sublanes, hidden on lanes
    c = jnp.zeros((B, H), f32)
    out_acc = jnp.zeros((B, w_eff), f32)

    first_out_t = seq_len - w_eff

    # ---- fully unrolled recurrence (seq_len is static and small) -------------------
    # Lanes >= hidden of h/c stay exactly 0 (zero initial state + zero weight/bias
    # padding), so the recurrent sum only needs `hidden` terms.
    for t in range(seq_len):
        # input projection for step t — off the serial h/c chain
        xp = bias_b
        for k in range(input_size):
            xk = x[:, t * input_size + k:t * input_size + k + 1]      # (B, 1)
            xp = xp + xk * wih_rows[k]                                # (B, G)

        # recurrent term h_{t-1} @ W_hh^T: VPU broadcast-multiplies + tree add —
        # no MXU, no XLU reduce, no lane<->sublane flip on the serial chain.
        if t == 0:
            gates = xp                                                # h_{-1} == 0
        else:
            rec = _tree_sum([h[:, k:k + 1] * whh_rows[k] for k in range(hidden)])
            gates = xp + rec                                          # (B, G)

        # fused gate activations: 2 EUP passes over the whole (B, 4H) gate block
        sig_all = jax.nn.sigmoid(gates)
        tanh_all = jnp.tanh(gates)
        i_g = sig_all[:, 0 * H:1 * H]
        f_g = sig_all[:, 1 * H:2 * H]
        g_g = tanh_all[:, 2 * H:3 * H]
        o_g = sig_all[:, 3 * H:4 * H]

        if t == 0:
            c = i_g * g_g                                             # c_{-1} == 0
        else:
            c = f_g * c + i_g * g_g
        h = o_g * jnp.tanh(c)

        # linear head for the last `w_eff` steps — off the serial chain; the scalar is
        # placed in its output lane with a one-hot mask (no per-step VMEM store).
        if t >= first_out_t:
            y = jnp.sum(h * wlin_b, axis=1, keepdims=True)            # (B, 1) lane reduce
            out_acc = out_acc + y * onehot[t - first_out_t]

    # ---- one sigmoid pass + one lane-dense store / contiguous writeback ------------
    out_ref[...] = jax.nn.sigmoid(out_acc + blin)


def _pad_gate_blocks(w, hidden):
    """(4*hidden, X) -> (4*_HIDDEN_PAD, X): zero-pad each gate block (order i,f,g,o)."""
    x_dim = w.shape[1]
    w4 = w.reshape(4, hidden, x_dim)
    out = jnp.zeros((4, _HIDDEN_PAD, x_dim), w.dtype).at[:, :hidden, :].set(w4)
    return out.reshape(4 * _HIDDEN_PAD, x_dim)


def _pack_params(w_ih, w_hh, b_ih, b_hh, w_lin, b_lin, hidden, x_flat=None):
    """Pack LSTM + head params (and optionally the inputs) into ONE (8,128) f32 tile."""
    input_size = w_ih.shape[1]
    H = _HIDDEN_PAD
    G = 4 * H
    assert hidden <= H and input_size <= H and w_lin.shape[0] == 1, (
        "packed layout assumes hidden<=8, input_size<=8, output_size==1")

    wih_t = _pad_gate_blocks(w_ih, hidden).T                               # (in, G)
    whh = _pad_gate_blocks(w_hh, hidden)                                   # (G, hidden)
    whh = jnp.zeros((G, H), jnp.float32).at[:, :hidden].set(whh)
    whh_t = whh.T                                                          # (H, G)
    bias = _pad_gate_blocks((b_ih + b_hh).reshape(4 * hidden, 1),
                            hidden).reshape(1, G)                          # (1, G)
    wlin_row = jnp.zeros((1, H), jnp.float32).at[:, :hidden].set(
        w_lin.reshape(1, hidden))
    blin = b_lin.reshape(1, 1)

    p = jnp.zeros((8, 128), jnp.float32)
    p = p.at[0:H, 0:G].set(whh_t)
    p = p.at[0:input_size, G:2 * G].set(wih_t)
    p = p.at[0:1, 2 * G:3 * G].set(bias)
    p = p.at[1:2, 2 * G:2 * G + H].set(wlin_row)
    p = p.at[2:3, 2 * G:2 * G + 1].set(blin)
    if x_flat is not None:
        b, l = x_flat.shape
        assert b <= 8 and 3 * G + l <= 128
        p = p.at[0:b, 3 * G:3 * G + l].set(x_flat)                          # fold x in
    return p


def lstm_forward_batched(input_seqs, params, *, window):
    """Run B independent sequences through LSTM + Linear + Sigmoid in one/few calls.

    input_seqs: (B, seq_len) for input_size==1, or (B, seq_len, input_size).
    Returns (B, min(window, seq_len)).
    """
    w_ih, w_hh, b_ih, b_hh, w_lin, b_lin = [jnp.asarray(p, jnp.float32) for p in params]
    hidden = w_hh.shape[1]
    input_size = w_ih.shape[1]

    x = jnp.asarray(input_seqs, jnp.float32)
    if x.ndim == 2:
        x = x[:, :, None]
    B, seq_len, in_dim = x.shape
    assert in_dim == input_size
    L = seq_len * input_size
    x_flat = x.reshape(B, L)
    w_eff = min(window, seq_len)
    G = 4 * _HIDDEN_PAD

    kernel_kwargs = dict(hidden=hidden, input_size=input_size,
                         seq_len=seq_len, w_eff=w_eff)

    if B <= _B_TILE and 3 * G + L <= 128:
        # Single invocation: params AND inputs share one (8,128) tile -> ONE input DMA.
        packed = _pack_params(w_ih, w_hh, b_ih, b_hh, w_lin, b_lin, hidden,
                              x_flat=x_flat)
        kernel = functools.partial(_lstm_kernel, x_packed=True, **kernel_kwargs)
        return pl.pallas_call(
            kernel,
            out_shape=jax.ShapeDtypeStruct((B, w_eff), jnp.float32),
            in_specs=[pl.BlockSpec(memory_space=pltpu.MemorySpace.VMEM)],
            out_specs=pl.BlockSpec(memory_space=pltpu.MemorySpace.VMEM),
        )(packed)

    # Larger batches / longer sequences: x travels as a lane-dense (B, seq*in) array
    # and a leading "parallel" grid axis shards sequence blocks across cores (v7x 2xTC).
    packed = _pack_params(w_ih, w_hh, b_ih, b_hh, w_lin, b_lin, hidden)
    b_pad = pl.cdiv(B, _B_TILE) * _B_TILE
    x_pad = jnp.zeros((b_pad, L), jnp.float32).at[:B].set(x_flat)
    kernel = functools.partial(_lstm_kernel, x_packed=False, **kernel_kwargs)
    out = pl.pallas_call(
        kernel,
        out_shape=jax.ShapeDtypeStruct((b_pad, w_eff), jnp.float32),
        grid=(b_pad // _B_TILE,),
        in_specs=[pl.BlockSpec((8, 128), lambda i: (0, 0)),
                  pl.BlockSpec((_B_TILE, L), lambda i: (i, 0))],
        out_specs=pl.BlockSpec((_B_TILE, w_eff), lambda i: (i, 0)),
        compiler_params=pltpu.CompilerParams(dimension_semantics=("parallel",)),
    )(packed, x_pad)
    return out[:B]


def lstm_forward(input_seq, params, *, window):
    """Mirrors LSTM.forward: sigmoid(Linear(LSTM(x)))[-window:] for one 1-D sequence."""
    # TODO(synk): persistent self.hidden_cell state is not carried across calls.
    input_size = jnp.asarray(params[0]).shape[1]
    x = jnp.asarray(input_seq, jnp.float32).reshape(-1, input_size)
    out = lstm_forward_batched(x[None], params, window=window)        # (1, w_eff)
    return out.reshape(-1)


def lstm_reference(input_seq, params, *, window):
    """Pure-JAX float32 reference matching the PyTorch module."""
    w_ih, w_hh, b_ih, b_hh, w_lin, b_lin = [jnp.asarray(p, jnp.float32) for p in params]
    hidden = w_hh.shape[1]
    x = jnp.asarray(input_seq, jnp.float32).reshape(-1, w_ih.shape[1])

    def step(carry, x_t):
        h, c = carry
        gates = x_t @ w_ih.T + h @ w_hh.T + b_ih + b_hh
        i = jax.nn.sigmoid(gates[0:hidden])
        f = jax.nn.sigmoid(gates[hidden:2 * hidden])
        g = jnp.tanh(gates[2 * hidden:3 * hidden])
        o = jax.nn.sigmoid(gates[3 * hidden:4 * hidden])
        c = f * c + i * g
        h = o * jnp.tanh(c)
        return (h, c), h

    init = (jnp.zeros((hidden,), jnp.float32), jnp.zeros((hidden,), jnp.float32))
    _, hs = jax.lax.scan(step, init, x)
    preds = hs @ w_lin.T + b_lin
    return jax.nn.sigmoid(preds[-window:].reshape(-1))


def init_params(key, input_size=1, hidden_size=5, output_size=1):
    """Deterministic init matching PyTorch shapes: U(-1/sqrt(H), 1/sqrt(H))."""
    ks = jax.random.split(key, 6)
    s = 1.0 / jnp.sqrt(hidden_size)
    w_ih = jax.random.uniform(ks[0], (4 * hidden_size, input_size), jnp.float32, -s, s)
    w_hh = jax.random.uniform(ks[1], (4 * hidden_size, hidden_size), jnp.float32, -s, s)
    b_ih = jax.random.uniform(ks[2], (4 * hidden_size,), jnp.float32, -s, s)
    b_hh = jax.random.uniform(ks[3], (4 * hidden_size,), jnp.float32, -s, s)
    w_lin = jax.random.uniform(ks[4], (output_size, hidden_size), jnp.float32, -s, s)
    b_lin = jax.random.uniform(ks[5], (output_size,), jnp.float32, -s, s)
    return (w_ih, w_hh, b_ih, b_hh, w_lin, b_lin)


if __name__ == "__main__":
    key = jax.random.PRNGKey(0)
    k_param, k1, k2, k3 = jax.random.split(key, 4)

    input_size, hidden_size, output_size, window = 1, 5, 1, 10
    seq_len = 16

    params = init_params(k_param, input_size, hidden_size, output_size)

    # 1) single sequence — exact module semantics (B=1, x folded into the param tile)
    seq = jax.random.normal(k1, (seq_len,), jnp.float32)
    out = jax.block_until_ready(lstm_forward(seq, params, window=window))
    ref = jax.block_until_ready(lstm_reference(seq, params, window=window))
    assert out.shape == (window,), out.shape
    assert bool(jnp.all(jnp.isfinite(out)))
    assert bool(jnp.allclose(out, ref, atol=2e-3, rtol=2e-3)), (out, ref)

    # 2) sublane-batched: 4 sequences in ONE pallas_call, still a single input DMA
    B = 4
    seqs = jax.random.normal(k2, (B, seq_len), jnp.float32)
    out_b = jax.block_until_ready(lstm_forward_batched(seqs, params, window=window))
    ref_b = jnp.stack([lstm_reference(seqs[b], params, window=window) for b in range(B)])
    assert out_b.shape == (B, window), out_b.shape
    assert bool(jnp.allclose(out_b, ref_b, atol=2e-3, rtol=2e-3)), (out_b, ref_b)

    # 3) larger batch: leading "parallel" grid axis over sequence blocks (v7x 2 TCs)
    B = 12
    seqs = jax.random.normal(k3, (B, seq_len), jnp.float32)
    out_g = jax.block_until_ready(lstm_forward_batched(seqs, params, window=window))
    ref_g = jnp.stack([lstm_reference(seqs[b], params, window=window) for b in range(B)])
    assert out_g.shape == (B, window), out_g.shape
    assert bool(jnp.allclose(out_g, ref_g, atol=2e-3, rtol=2e-3)), (out_g, ref_g)

    print("KERNEL_OK")
</pallas_src>

<mosaic_0001>
module attributes {stable_mosaic.version = 11 : i64} {
  func.func @_lstm_kernel(%arg0: memref<8x128xf32, #tpu.memory_space<vmem>>, %arg1: memref<1x10xf32, #tpu.memory_space<vmem>>) attributes {dimension_semantics = [], scalar_prefetch = 0 : i64, scratch_operands = 0 : i64, tpu.core_type = #tpu.core_type<tc>} {
    %c0 = arith.constant 0 : index
    %c0_0 = arith.constant 0 : index
    %0 = vector.load %arg0[%c0, %c0_0] : memref<8x128xf32, #tpu.memory_space<vmem>>, vector<8x32xf32>
    %c0_1 = arith.constant 0 : index
    %c32 = arith.constant 32 : index
    %1 = vector.load %arg0[%c0_1, %c32] : memref<8x128xf32, #tpu.memory_space<vmem>>, vector<1x32xf32>
    %c0_2 = arith.constant 0 : index
    %c64 = arith.constant 64 : index
    %2 = vector.load %arg0[%c0_2, %c64] : memref<8x128xf32, #tpu.memory_space<vmem>>, vector<1x32xf32>
    %c1 = arith.constant 1 : index
    %c64_3 = arith.constant 64 : index
    %3 = vector.load %arg0[%c1, %c64_3] : memref<8x128xf32, #tpu.memory_space<vmem>>, vector<1x8xf32>
    %c2 = arith.constant 2 : index
    %c64_4 = arith.constant 64 : index
    %4 = vector.load %arg0[%c2, %c64_4] : memref<8x128xf32, #tpu.memory_space<vmem>>, vector<1x1xf32>
    %c0_5 = arith.constant 0 : index
    %c96 = arith.constant 96 : index
    %5 = vector.load %arg0[%c0_5, %c96] : memref<8x128xf32, #tpu.memory_space<vmem>>, vector<1x16xf32>
    %6 = vector.extract_strided_slice %0 {offsets = [0, 0], sizes = [1, 32], strides = [1, 1]} : vector<8x32xf32> to vector<1x32xf32>
    %7 = vector.extract_strided_slice %0 {offsets = [1, 0], sizes = [1, 32], strides = [1, 1]} : vector<8x32xf32> to vector<1x32xf32>
    %8 = vector.extract_strided_slice %0 {offsets = [2, 0], sizes = [1, 32], strides = [1, 1]} : vector<8x32xf32> to vector<1x32xf32>
    %9 = vector.extract_strided_slice %0 {offsets = [3, 0], sizes = [1, 32], strides = [1, 1]} : vector<8x32xf32> to vector<1x32xf32>
    %10 = vector.extract_strided_slice %0 {offsets = [4, 0], sizes = [1, 32], strides = [1, 1]} : vector<8x32xf32> to vector<1x32xf32>
    %11 = tpu.iota {dimensions = array<i32: 1>} : vector<1x10xi32>
    %c0_i32 = arith.constant 0 : i32
    %12 = vector.broadcast %c0_i32 : i32 to vector<1x10xi32>
    %13 = arith.cmpi eq, %11, %12 : vector<1x10xi32>
    %14 = arith.extui %13 : vector<1x10xi1> to vector<1x10xi32>
    %15 = arith.sitofp %14 : vector<1x10xi32> to vector<1x10xf32>
    %c1_i32 = arith.constant 1 : i32
    %16 = vector.broadcast %c1_i32 : i32 to vector<1x10xi32>
    %17 = arith.cmpi eq, %11, %16 : vector<1x10xi32>
    %18 = arith.extui %17 : vector<1x10xi1> to vector<1x10xi32>
    %19 = arith.sitofp %18 : vector<1x10xi32> to vector<1x10xf32>
    %c2_i32 = arith.constant 2 : i32
    %20 = vector.broadcast %c2_i32 : i32 to vector<1x10xi32>
    %21 = arith.cmpi eq, %11, %20 : vector<1x10xi32>
    %22 = arith.extui %21 : vector<1x10xi1> to vector<1x10xi32>
    %23 = arith.sitofp %22 : vector<1x10xi32> to vector<1x10xf32>
    %c3_i32 = arith.constant 3 : i32
    %24 = vector.broadcast %c3_i32 : i32 to vector<1x10xi32>
    %25 = arith.cmpi eq, %11, %24 : vector<1x10xi32>
    %26 = arith.extui %25 : vector<1x10xi1> to vector<1x10xi32>
    %27 = arith.sitofp %26 : vector<1x10xi32> to vector<1x10xf32>
    %c4_i32 = arith.constant 4 : i32
    %28 = vector.broadcast %c4_i32 : i32 to vector<1x10xi32>
    %29 = arith.cmpi eq, %11, %28 : vector<1x10xi32>
    %30 = arith.extui %29 : vector<1x10xi1> to vector<1x10xi32>
    %31 = arith.sitofp %30 : vector<1x10xi32> to vector<1x10xf32>
    %c5_i32 = arith.constant 5 : i32
    %32 = vector.broadcast %c5_i32 : i32 to vector<1x10xi32>
    %33 = arith.cmpi eq, %11, %32 : vector<1x10xi32>
    %34 = arith.extui %33 : vector<1x10xi1> to vector<1x10xi32>
    %35 = arith.sitofp %34 : vector<1x10xi32> to vector<1x10xf32>
    %c6_i32 = arith.constant 6 : i32
    %36 = vector.broadcast %c6_i32 : i32 to vector<1x10xi32>
    %37 = arith.cmpi eq, %11, %36 : vector<1x10xi32>
    %38 = arith.extui %37 : vector<1x10xi1> to vector<1x10xi32>
    %39 = arith.sitofp %38 : vector<1x10xi32> to vector<1x10xf32>
    %c7_i32 = arith.constant 7 : i32
    %40 = vector.broadcast %c7_i32 : i32 to vector<1x10xi32>
    %41 = arith.cmpi eq, %11, %40 : vector<1x10xi32>
    %42 = arith.extui %41 : vector<1x10xi1> to vector<1x10xi32>
    %43 = arith.sitofp %42 : vector<1x10xi32> to vector<1x10xf32>
    %c8_i32 = arith.constant 8 : i32
    %44 = vector.broadcast %c8_i32 : i32 to vector<1x10xi32>
    %45 = arith.cmpi eq, %11, %44 : vector<1x10xi32>
    %46 = arith.extui %45 : vector<1x10xi1> to vector<1x10xi32>
    %47 = arith.sitofp %46 : vector<1x10xi32> to vector<1x10xf32>
    %c9_i32 = arith.constant 9 : i32
    %48 = vector.broadcast %c9_i32 : i32 to vector<1x10xi32>
    %49 = arith.cmpi eq, %11, %48 : vector<1x10xi32>
    %50 = arith.extui %49 : vector<1x10xi1> to vector<1x10xi32>
    %51 = arith.sitofp %50 : vector<1x10xi32> to vector<1x10xf32>
    %cst = arith.constant 0.000000e+00 : f32
    %52 = vector.broadcast %cst : f32 to vector<1x10xf32>
    %53 = vector.extract_strided_slice %5 {offsets = [0, 0], sizes = [1, 1], strides = [1, 1]} : vector<1x16xf32> to vector<1x1xf32>
    %54 = vector.broadcast %53 : vector<1x1xf32> to vector<1x32xf32>
    %55 = arith.mulf %54, %1 : vector<1x32xf32>
    %56 = arith.addf %2, %55 : vector<1x32xf32>
    %57 = arith.negf %56 : vector<1x32xf32>
    %58 = math.exp %57 : vector<1x32xf32>
    %cst_6 = arith.constant 1.000000e+00 : f32
    %59 = vector.broadcast %cst_6 : f32 to vector<1x32xf32>
    %60 = arith.addf %59, %58 : vector<1x32xf32>
    %61 = arith.divf %59, %60 : vector<1x32xf32>
    %62 = math.tanh %56 : vector<1x32xf32>
    %63 = vector.extract_strided_slice %61 {offsets = [0, 0], sizes = [1, 8], strides = [1, 1]} : vector<1x32xf32> to vector<1x8xf32>
    %64 = vector.extract_strided_slice %62 {offsets = [0, 16], sizes = [1, 8], strides = [1, 1]} : vector<1x32xf32> to vector<1x8xf32>
    %65 = vector.extract_strided_slice %61 {offsets = [0, 24], sizes = [1, 8], strides = [1, 1]} : vector<1x32xf32> to vector<1x8xf32>
    %66 = arith.mulf %63, %64 : vector<1x8xf32>
    %67 = math.tanh %66 : vector<1x8xf32>
    %68 = arith.mulf %65, %67 : vector<1x8xf32>
    %69 = vector.extract_strided_slice %5 {offsets = [0, 1], sizes = [1, 1], strides = [1, 1]} : vector<1x16xf32> to vector<1x1xf32>
    %70 = vector.broadcast %69 : vector<1x1xf32> to vector<1x32xf32>
    %71 = arith.mulf %70, %1 : vector<1x32xf32>
    %72 = arith.addf %2, %71 : vector<1x32xf32>
    %73 = vector.extract_strided_slice %68 {offsets = [0, 0], sizes = [1, 1], strides = [1, 1]} : vector<1x8xf32> to vector<1x1xf32>
    %74 = vector.broadcast %73 : vector<1x1xf32> to vector<1x32xf32>
    %75 = arith.mulf %74, %6 : vector<1x32xf32>
    %76 = vector.extract_strided_slice %68 {offsets = [0, 1], sizes = [1, 1], strides = [1, 1]} : vector<1x8xf32> to vector<1x1xf32>
    %77 = vector.broadcast %76 : vector<1x1xf32> to vector<1x32xf32>
    %78 = arith.mulf %77, %7 : vector<1x32xf32>
    %79 = vector.extract_strided_slice %68 {offsets = [0, 2], sizes = [1, 1], strides = [1, 1]} : vector<1x8xf32> to vector<1x1xf32>
    %80 = vector.broadcast %79 : vector<1x1xf32> to vector<1x32xf32>
    %81 = arith.mulf %80, %8 : vector<1x32xf32>
    %82 = vector.extract_strided_slice %68 {offsets = [0, 3], sizes = [1, 1], strides = [1, 1]} : vector<1x8xf32> to vector<1x1xf32>
    %83 = vector.broadcast %82 : vector<1x1xf32> to vector<1x32xf32>
    %84 = arith.mulf %83, %9 : vector<1x32xf32>
    %85 = vector.extract_strided_slice %68 {offsets = [0, 4], sizes = [1, 1], strides = [1, 1]} : vector<1x8xf32> to vector<1x1xf32>
    %86 = vector.broadcast %85 : vector<1x1xf32> to vector<1x32xf32>
    %87 = arith.mulf %86, %10 : vector<1x32xf32>
    %88 = arith.addf %75, %78 : vector<1x32xf32>
    %89 = arith.addf %81, %84 : vector<1x32xf32>
    %90 = arith.addf %88, %89 : vector<1x32xf32>
    %91 = arith.addf %90, %87 : vector<1x32xf32>
    %92 = arith.addf %72, %91 : vector<1x32xf32>
    %93 = arith.negf %92 : vector<1x32xf32>
    %94 = math.exp %93 : vector<1x32xf32>
    %cst_7 = arith.constant 1.000000e+00 : f32
    %95 = vector.broadcast %cst_7 : f32 to vector<1x32xf32>
    %96 = arith.addf %95, %94 : vector<1x32xf32>
    %97 = arith.divf %95, %96 : vector<1x32xf32>
    %98 = math.tanh %92 : vector<1x32xf32>
    %99 = vector.extract_strided_slice %97 {offsets = [0, 0], sizes = [1, 8], strides = [1, 1]} : vector<1x32xf32> to vector<1x8xf32>
    %100 = vector.extract_strided_slice %97 {offsets = [0, 8], sizes = [1, 8], strides = [1, 1]} : vector<1x32xf32> to vector<1x8xf32>
    %101 = vector.extract_strided_slice %98 {offsets = [0, 16], sizes = [1, 8], strides = [1, 1]} : vector<1x32xf32> to vector<1x8xf32>
    %102 = vector.extract_strided_slice %97 {offsets = [0, 24], sizes = [1, 8], strides = [1, 1]} : vector<1x32xf32> to vector<1x8xf32>
    %103 = arith.mulf %100, %66 : vector<1x8xf32>
    %104 = arith.mulf %99, %101 : vector<1x8xf32>
    %105 = arith.addf %103, %104 : vector<1x8xf32>
    %106 = math.tanh %105 : vector<1x8xf32>
    %107 = arith.mulf %102, %106 : vector<1x8xf32>
    %108 = vector.extract_strided_slice %5 {offsets = [0, 2], sizes = [1, 1], strides = [1, 1]} : vector<1x16xf32> to vector<1x1xf32>
    %109 = vector.broadcast %108 : vector<1x1xf32> to vector<1x32xf32>
    %110 = arith.mulf %109, %1 : vector<1x32xf32>
    %111 = arith.addf %2, %110 : vector<1x32xf32>
    %112 = vector.extract_strided_slice %107 {offsets = [0, 0], sizes = [1, 1], strides = [1, 1]} : vector<1x8xf32> to vector<1x1xf32>
    %113 = vector.broadcast %112 : vector<1x1xf32> to vector<1x32xf32>
    %114 = arith.mulf %113, %6 : vector<1x32xf32>
    %115 = vector.extract_strided_slice %107 {offsets = [0, 1], sizes = [1, 1], strides = [1, 1]} : vector<1x8xf32> to vector<1x1xf32>
    %116 = vector.broadcast %115 : vector<1x1xf32> to vector<1x32xf32>
    %117 = arith.mulf %116, %7 : vector<1x32xf32>
    %118 = vector.extract_strided_slice %107 {offsets = [0, 2], sizes = [1, 1], strides = [1, 1]} : vector<1x8xf32> to vector<1x1xf32>
    %119 = vector.broadcast %118 : vector<1x1xf32> to vector<1x32xf32>
    %120 = arith.mulf %119, %8 : vector<1x32xf32>
    %121 = vector.extract_strided_slice %107 {offsets = [0, 3], sizes = [1, 1], strides = [1, 1]} : vector<1x8xf32> to vector<1x1xf32>
    %122 = vector.broadcast %121 : vector<1x1xf32> to vector<1x32xf32>
    %123 = arith.mulf %122, %9 : vector<1x32xf32>
    %124 = vector.extract_strided_slice %107 {offsets = [0, 4], sizes = [1, 1], strides = [1, 1]} : vector<1x8xf32> to vector<1x1xf32>
    %125 = vector.broadcast %124 : vector<1x1xf32> to vector<1x32xf32>
    %126 = arith.mulf %125, %10 : vector<1x32xf32>
    %127 = arith.addf %114, %117 : vector<1x32xf32>
    %128 = arith.addf %120, %123 : vector<1x32xf32>
    %129 = arith.addf %127, %128 : vector<1x32xf32>
    %130 = arith.addf %129, %126 : vector<1x32xf32>
    %131 = arith.addf %111, %130 : vector<1x32xf32>
    %132 = arith.negf %131 : vector<1x32xf32>
    %133 = math.exp %132 : vector<1x32xf32>
    %cst_8 = arith.constant 1.000000e+00 : f32
    %134 = vector.broadcast %cst_8 : f32 to vector<1x32xf32>
    %135 = arith.addf %134, %133 : vector<1x32xf32>
    %136 = arith.divf %134, %135 : vector<1x32xf32>
    %137 = math.tanh %131 : vector<1x32xf32>
    %138 = vector.extract_strided_slice %136 {offsets = [0, 0], sizes = [1, 8], strides = [1, 1]} : vector<1x32xf32> to vector<1x8xf32>
    %139 = vector.extract_strided_slice %136 {offsets = [0, 8], sizes = [1, 8], strides = [1, 1]} : vector<1x32xf32> to vector<1x8xf32>
    %140 = vector.extract_strided_slice %137 {offsets = [0, 16], sizes = [1, 8], strides = [1, 1]} : vector<1x32xf32> to vector<1x8xf32>
    %141 = vector.extract_strided_slice %136 {offsets = [0, 24], sizes = [1, 8], strides = [1, 1]} : vector<1x32xf32> to vector<1x8xf32>
    %142 = arith.mulf %139, %105 : vector<1x8xf32>
    %143 = arith.mulf %138, %140 : vector<1x8xf32>
    %144 = arith.addf %142, %143 : vector<1x8xf32>
    %145 = math.tanh %144 : vector<1x8xf32>
    %146 = arith.mulf %141, %145 : vector<1x8xf32>
    %147 = vector.extract_strided_slice %5 {offsets = [0, 3], sizes = [1, 1], strides = [1, 1]} : vector<1x16xf32> to vector<1x1xf32>
    %148 = vector.broadcast %147 : vector<1x1xf32> to vector<1x32xf32>
    %149 = arith.mulf %148, %1 : vector<1x32xf32>
    %150 = arith.addf %2, %149 : vector<1x32xf32>
    %151 = vector.extract_strided_slice %146 {offsets = [0, 0], sizes = [1, 1], strides = [1, 1]} : vector<1x8xf32> to vector<1x1xf32>
    %152 = vector.broadcast %151 : vector<1x1xf32> to vector<1x32xf32>
    %153 = arith.mulf %152, %6 : vector<1x32xf32>
    %154 = vector.extract_strided_slice %146 {offsets = [0, 1], sizes = [1, 1], strides = [1, 1]} : vector<1x8xf32> to vector<1x1xf32>
    %155 = vector.broadcast %154 : vector<1x1xf32> to vector<1x32xf32>
    %156 = arith.mulf %155, %7 : vector<1x32xf32>
    %157 = vector.extract_strided_slice %146 {offsets = [0, 2], sizes = [1, 1], strides = [1, 1]} : vector<1x8xf32> to vector<1x1xf32>
    %158 = vector.broadcast %157 : vector<1x1xf32> to vector<1x32xf32>
    %159 = arith.mulf %158, %8 : vector<1x32xf32>
    %160 = vector.extract_strided_slice %146 {offsets = [0, 3], sizes = [1, 1], strides = [1, 1]} : vector<1x8xf32> to vector<1x1xf32>
    %161 = vector.broadcast %160 : vector<1x1xf32> to vector<1x32xf32>
    %162 = arith.mulf %161, %9 : vector<1x32xf32>
    %163 = vector.extract_strided_slice %146 {offsets = [0, 4], sizes = [1, 1], strides = [1, 1]} : vector<1x8xf32> to vector<1x1xf32>
    %164 = vector.broadcast %163 : vector<1x1xf32> to vector<1x32xf32>
    %165 = arith.mulf %164, %10 : vector<1x32xf32>
    %166 = arith.addf %153, %156 : vector<1x32xf32>
    %167 = arith.addf %159, %162 : vector<1x32xf32>
    %168 = arith.addf %166, %167 : vector<1x32xf32>
    %169 = arith.addf %168, %165 : vector<1x32xf32>
    %170 = arith.addf %150, %169 : vector<1x32xf32>
    %171 = arith.negf %170 : vector<1x32xf32>
    %172 = math.exp %171 : vector<1x32xf32>
    %cst_9 = arith.constant 1.000000e+00 : f32
    %173 = vector.broadcast %cst_9 : f32 to vector<1x32xf32>
    %174 = arith.addf %173, %172 : vector<1x32xf32>
    %175 = arith.divf %173, %174 : vector<1x32xf32>
    %176 = math.tanh %170 : vector<1x32xf32>
    %177 = vector.extract_strided_slice %175 {offsets = [0, 0], sizes = [1, 8], strides = [1, 1]} : vector<1x32xf32> to vector<1x8xf32>
    %178 = vector.extract_strided_slice %175 {offsets = [0, 8], sizes = [1, 8], strides = [1, 1]} : vector<1x32xf32> to vector<1x8xf32>
    %179 = vector.extract_strided_slice %176 {offsets = [0, 16], sizes = [1, 8], strides = [1, 1]} : vector<1x32xf32> to vector<1x8xf32>
    %180 = vector.extract_strided_slice %175 {offsets = [0, 24], sizes = [1, 8], strides = [1, 1]} : vector<1x32xf32> to vector<1x8xf32>
    %181 = arith.mulf %178, %144 : vector<1x8xf32>
    %182 = arith.mulf %177, %179 : vector<1x8xf32>
    %183 = arith.addf %181, %182 : vector<1x8xf32>
    %184 = math.tanh %183 : vector<1x8xf32>
    %185 = arith.mulf %180, %184 : vector<1x8xf32>
    %186 = vector.extract_strided_slice %5 {offsets = [0, 4], sizes = [1, 1], strides = [1, 1]} : vector<1x16xf32> to vector<1x1xf32>
    %187 = vector.broadcast %186 : vector<1x1xf32> to vector<1x32xf32>
    %188 = arith.mulf %187, %1 : vector<1x32xf32>
    %189 = arith.addf %2, %188 : vector<1x32xf32>
    %190 = vector.extract_strided_slice %185 {offsets = [0, 0], sizes = [1, 1], strides = [1, 1]} : vector<1x8xf32> to vector<1x1xf32>
    %191 = vector.broadcast %190 : vector<1x1xf32> to vector<1x32xf32>
    %192 = arith.mulf %191, %6 : vector<1x32xf32>
    %193 = vector.extract_strided_slice %185 {offsets = [0, 1], sizes = [1, 1], strides = [1, 1]} : vector<1x8xf32> to vector<1x1xf32>
    %194 = vector.broadcast %193 : vector<1x1xf32> to vector<1x32xf32>
    %195 = arith.mulf %194, %7 : vector<1x32xf32>
    %196 = vector.extract_strided_slice %185 {offsets = [0, 2], sizes = [1, 1], strides = [1, 1]} : vector<1x8xf32> to vector<1x1xf32>
    %197 = vector.broadcast %196 : vector<1x1xf32> to vector<1x32xf32>
    %198 = arith.mulf %197, %8 : vector<1x32xf32>
    %199 = vector.extract_strided_slice %185 {offsets = [0, 3], sizes = [1, 1], strides = [1, 1]} : vector<1x8xf32> to vector<1x1xf32>
    %200 = vector.broadcast %199 : vector<1x1xf32> to vector<1x32xf32>
    %201 = arith.mulf %200, %9 : vector<1x32xf32>
    %202 = vector.extract_strided_slice %185 {offsets = [0, 4], sizes = [1, 1], strides = [1, 1]} : vector<1x8xf32> to vector<1x1xf32>
    %203 = vector.broadcast %202 : vector<1x1xf32> to vector<1x32xf32>
    %204 = arith.mulf %203, %10 : vector<1x32xf32>
    %205 = arith.addf %192, %195 : vector<1x32xf32>
    %206 = arith.addf %198, %201 : vector<1x32xf32>
    %207 = arith.addf %205, %206 : vector<1x32xf32>
    %208 = arith.addf %207, %204 : vector<1x32xf32>
    %209 = arith.addf %189, %208 : vector<1x32xf32>
    %210 = arith.negf %209 : vector<1x32xf32>
    %211 = math.exp %210 : vector<1x32xf32>
    %cst_10 = arith.constant 1.000000e+00 : f32
    %212 = vector.broadcast %cst_10 : f32 to vector<1x32xf32>
    %213 = arith.addf %212, %211 : vector<1x32xf32>
    %214 = arith.divf %212, %213 : vector<1x32xf32>
    %215 = math.tanh %209 : vector<1x32xf32>
    %216 = vector.extract_strided_slice %214 {offsets = [0, 0], sizes = [1, 8], strides = [1, 1]} : vector<1x32xf32> to vector<1x8xf32>
    %217 = vector.extract_strided_slice %214 {offsets = [0, 8], sizes = [1, 8], strides = [1, 1]} : vector<1x32xf32> to vector<1x8xf32>
    %218 = vector.extract_strided_slice %215 {offsets = [0, 16], sizes = [1, 8], strides = [1, 1]} : vector<1x32xf32> to vector<1x8xf32>
    %219 = vector.extract_strided_slice %214 {offsets = [0, 24], sizes = [1, 8], strides = [1, 1]} : vector<1x32xf32> to vector<1x8xf32>
    %220 = arith.mulf %217, %183 : vector<1x8xf32>
    %221 = arith.mulf %216, %218 : vector<1x8xf32>
    %222 = arith.addf %220, %221 : vector<1x8xf32>
    %223 = math.tanh %222 : vector<1x8xf32>
    %224 = arith.mulf %219, %223 : vector<1x8xf32>
    %225 = vector.extract_strided_slice %5 {offsets = [0, 5], sizes = [1, 1], strides = [1, 1]} : vector<1x16xf32> to vector<1x1xf32>
    %226 = vector.broadcast %225 : vector<1x1xf32> to vector<1x32xf32>
    %227 = arith.mulf %226, %1 : vector<1x32xf32>
    %228 = arith.addf %2, %227 : vector<1x32xf32>
    %229 = vector.extract_strided_slice %224 {offsets = [0, 0], sizes = [1, 1], strides = [1, 1]} : vector<1x8xf32> to vector<1x1xf32>
    %230 = vector.broadcast %229 : vector<1x1xf32> to vector<1x32xf32>
    %231 = arith.mulf %230, %6 : vector<1x32xf32>
    %232 = vector.extract_strided_slice %224 {offsets = [0, 1], sizes = [1, 1], strides = [1, 1]} : vector<1x8xf32> to vector<1x1xf32>
    %233 = vector.broadcast %232 : vector<1x1xf32> to vector<1x32xf32>
    %234 = arith.mulf %233, %7 : vector<1x32xf32>
    %235 = vector.extract_strided_slice %224 {offsets = [0, 2], sizes = [1, 1], strides = [1, 1]} : vector<1x8xf32> to vector<1x1xf32>
    %236 = vector.broadcast %235 : vector<1x1xf32> to vector<1x32xf32>
    %237 = arith.mulf %236, %8 : vector<1x32xf32>
    %238 = vector.extract_strided_slice %224 {offsets = [0, 3], sizes = [1, 1], strides = [1, 1]} : vector<1x8xf32> to vector<1x1xf32>
    %239 = vector.broadcast %238 : vector<1x1xf32> to vector<1x32xf32>
    %240 = arith.mulf %239, %9 : vector<1x32xf32>
    %241 = vector.extract_strided_slice %224 {offsets = [0, 4], sizes = [1, 1], strides = [1, 1]} : vector<1x8xf32> to vector<1x1xf32>
    %242 = vector.broadcast %241 : vector<1x1xf32> to vector<1x32xf32>
    %243 = arith.mulf %242, %10 : vector<1x32xf32>
    %244 = arith.addf %231, %234 : vector<1x32xf32>
    %245 = arith.addf %237, %240 : vector<1x32xf32>
    %246 = arith.addf %244, %245 : vector<1x32xf32>
    %247 = arith.addf %246, %243 : vector<1x32xf32>
    %248 = arith.addf %228, %247 : vector<1x32xf32>
    %249 = arith.negf %248 : vector<1x32xf32>
    %250 = math.exp %249 : vector<1x32xf32>
    %cst_11 = arith.constant 1.000000e+00 : f32
    %251 = vector.broadcast %cst_11 : f32 to vector<1x32xf32>
    %252 = arith.addf %251, %250 : vector<1x32xf32>
    %253 = arith.divf %251, %252 : vector<1x32xf32>
    %254 = math.tanh %248 : vector<1x32xf32>
    %255 = vector.extract_strided_slice %253 {offsets = [0, 0], sizes = [1, 8], strides = [1, 1]} : vector<1x32xf32> to vector<1x8xf32>
    %256 = vector.extract_strided_slice %253 {offsets = [0, 8], sizes = [1, 8], strides = [1, 1]} : vector<1x32xf32> to vector<1x8xf32>
    %257 = vector.extract_strided_slice %254 {offsets = [0, 16], sizes = [1, 8], strides = [1, 1]} : vector<1x32xf32> to vector<1x8xf32>
    %258 = vector.extract_strided_slice %253 {offsets = [0, 24], sizes = [1, 8], strides = [1, 1]} : vector<1x32xf32> to vector<1x8xf32>
    %259 = arith.mulf %256, %222 : vector<1x8xf32>
    %260 = arith.mulf %255, %257 : vector<1x8xf32>
    %261 = arith.addf %259, %260 : vector<1x8xf32>
    %262 = math.tanh %261 : vector<1x8xf32>
    %263 = arith.mulf %258, %262 : vector<1x8xf32>
    %264 = vector.extract_strided_slice %5 {offsets = [0, 6], sizes = [1, 1], strides = [1, 1]} : vector<1x16xf32> to vector<1x1xf32>
    %265 = vector.broadcast %264 : vector<1x1xf32> to vector<1x32xf32>
    %266 = arith.mulf %265, %1 : vector<1x32xf32>
    %267 = arith.addf %2, %266 : vector<1x32xf32>
    %268 = vector.extract_strided_slice %263 {offsets = [0, 0], sizes = [1, 1], strides = [1, 1]} : vector<1x8xf32> to vector<1x1xf32>
    %269 = vector.broadcast %268 : vector<1x1xf32> to vector<1x32xf32>
    %270 = arith.mulf %269, %6 : vector<1x32xf32>
    %271 = vector.extract_strided_slice %263 {offsets = [0, 1], sizes = [1, 1], strides = [1, 1]} : vector<1x8xf32> to vector<1x1xf32>
    %272 = vector.broadcast %271 : vector<1x1xf32> to vector<1x32xf32>
    %273 = arith.mulf %272, %7 : vector<1x32xf32>
    %274 = vector.extract_strided_slice %263 {offsets = [0, 2], sizes = [1, 1], strides = [1, 1]} : vector<1x8xf32> to vector<1x1xf32>
    %275 = vector.broadcast %274 : vector<1x1xf32> to vector<1x32xf32>
    %276 = arith.mulf %275, %8 : vector<1x32xf32>
    %277 = vector.extract_strided_slice %263 {offsets = [0, 3], sizes = [1, 1], strides = [1, 1]} : vector<1x8xf32> to vector<1x1xf32>
    %278 = vector.broadcast %277 : vector<1x1xf32> to vector<1x32xf32>
    %279 = arith.mulf %278, %9 : vector<1x32xf32>
    %280 = vector.extract_strided_slice %263 {offsets = [0, 4], sizes = [1, 1], strides = [1, 1]} : vector<1x8xf32> to vector<1x1xf32>
    %281 = vector.broadcast %280 : vector<1x1xf32> to vector<1x32xf32>
    %282 = arith.mulf %281, %10 : vector<1x32xf32>
    %283 = arith.addf %270, %273 : vector<1x32xf32>
    %284 = arith.addf %276, %279 : vector<1x32xf32>
    %285 = arith.addf %283, %284 : vector<1x32xf32>
    %286 = arith.addf %285, %282 : vector<1x32xf32>
    %287 = arith.addf %267, %286 : vector<1x32xf32>
    %288 = arith.negf %287 : vector<1x32xf32>
    %289 = math.exp %288 : vector<1x32xf32>
    %cst_12 = arith.constant 1.000000e+00 : f32
    %290 = vector.broadcast %cst_12 : f32 to vector<1x32xf32>
    %291 = arith.addf %290, %289 : vector<1x32xf32>
    %292 = arith.divf %290, %291 : vector<1x32xf32>
    %293 = math.tanh %287 : vector<1x32xf32>
    %294 = vector.extract_strided_slice %292 {offsets = [0, 0], sizes = [1, 8], strides = [1, 1]} : vector<1x32xf32> to vector<1x8xf32>
    %295 = vector.extract_strided_slice %292 {offsets = [0, 8], sizes = [1, 8], strides = [1, 1]} : vector<1x32xf32> to vector<1x8xf32>
    %296 = vector.extract_strided_slice %293 {offsets = [0, 16], sizes = [1, 8], strides = [1, 1]} : vector<1x32xf32> to vector<1x8xf32>
    %297 = vector.extract_strided_slice %292 {offsets = [0, 24], sizes = [1, 8], strides = [1, 1]} : vector<1x32xf32> to vector<1x8xf32>
    %298 = arith.mulf %295, %261 : vector<1x8xf32>
    %299 = arith.mulf %294, %296 : vector<1x8xf32>
    %300 = arith.addf %298, %299 : vector<1x8xf32>
    %301 = math.tanh %300 : vector<1x8xf32>
    %302 = arith.mulf %297, %301 : vector<1x8xf32>
    %303 = arith.mulf %302, %3 : vector<1x8xf32>
    %cst_13 = arith.constant dense<0.000000e+00> : vector<1xf32>
    %304 = vector.multi_reduction <add>, %303, %cst_13 [1] : vector<1x8xf32> to vector<1xf32>
    %305 = vector.shape_cast %304 : vector<1xf32> to vector<1x1xf32>
    %306 = vector.broadcast %305 : vector<1x1xf32> to vector<1x10xf32>
    %307 = arith.mulf %306, %15 : vector<1x10xf32>
    %308 = arith.addf %52, %307 : vector<1x10xf32>
    %309 = vector.extract_strided_slice %5 {offsets = [0, 7], sizes = [1, 1], strides = [1, 1]} : vector<1x16xf32> to vector<1x1xf32>
    %310 = vector.broadcast %309 : vector<1x1xf32> to vector<1x32xf32>
    %311 = arith.mulf %310, %1 : vector<1x32xf32>
    %312 = arith.addf %2, %311 : vector<1x32xf32>
    %313 = vector.extract_strided_slice %302 {offsets = [0, 0], sizes = [1, 1], strides = [1, 1]} : vector<1x8xf32> to vector<1x1xf32>
    %314 = vector.broadcast %313 : vector<1x1xf32> to vector<1x32xf32>
    %315 = arith.mulf %314, %6 : vector<1x32xf32>
    %316 = vector.extract_strided_slice %302 {offsets = [0, 1], sizes = [1, 1], strides = [1, 1]} : vector<1x8xf32> to vector<1x1xf32>
    %317 = vector.broadcast %316 : vector<1x1xf32> to vector<1x32xf32>
    %318 = arith.mulf %317, %7 : vector<1x32xf32>
    %319 = vector.extract_strided_slice %302 {offsets = [0, 2], sizes = [1, 1], strides = [1, 1]} : vector<1x8xf32> to vector<1x1xf32>
    %320 = vector.broadcast %319 : vector<1x1xf32> to vector<1x32xf32>
    %321 = arith.mulf %320, %8 : vector<1x32xf32>
    %322 = vector.extract_strided_slice %302 {offsets = [0, 3], sizes = [1, 1], strides = [1, 1]} : vector<1x8xf32> to vector<1x1xf32>
    %323 = vector.broadcast %322 : vector<1x1xf32> to vector<1x32xf32>
    %324 = arith.mulf %323, %9 : vector<1x32xf32>
    %325 = vector.extract_strided_slice %302 {offsets = [0, 4], sizes = [1, 1], strides = [1, 1]} : vector<1x8xf32> to vector<1x1xf32>
    %326 = vector.broadcast %325 : vector<1x1xf32> to vector<1x32xf32>
    %327 = arith.mulf %326, %10 : vector<1x32xf32>
    %328 = arith.addf %315, %318 : vector<1x32xf32>
    %329 = arith.addf %321, %324 : vector<1x32xf32>
    %330 = arith.addf %328, %329 : vector<1x32xf32>
    %331 = arith.addf %330, %327 : vector<1x32xf32>
    %332 = arith.addf %312, %331 : vector<1x32xf32>
    %333 = arith.negf %332 : vector<1x32xf32>
    %334 = math.exp %333 : vector<1x32xf32>
    %cst_14 = arith.constant 1.000000e+00 : f32
    %335 = vector.broadcast %cst_14 : f32 to vector<1x32xf32>
    %336 = arith.addf %335, %334 : vector<1x32xf32>
    %337 = arith.divf %335, %336 : vector<1x32xf32>
    %338 = math.tanh %332 : vector<1x32xf32>
    %339 = vector.extract_strided_slice %337 {offsets = [0, 0], sizes = [1, 8], strides = [1, 1]} : vector<1x32xf32> to vector<1x8xf32>
    %340 = vector.extract_strided_slice %337 {offsets = [0, 8], sizes = [1, 8], strides = [1, 1]} : vector<1x32xf32> to vector<1x8xf32>
    %341 = vector.extract_strided_slice %338 {offsets = [0, 16], sizes = [1, 8], strides = [1, 1]} : vector<1x32xf32> to vector<1x8xf32>
    %342 = vector.extract_strided_slice %337 {offsets = [0, 24], sizes = [1, 8], strides = [1, 1]} : vector<1x32xf32> to vector<1x8xf32>
    %343 = arith.mulf %340, %300 : vector<1x8xf32>
    %344 = arith.mulf %339, %341 : vector<1x8xf32>
    %345 = arith.addf %343, %344 : vector<1x8xf32>
    %346 = math.tanh %345 : vector<1x8xf32>
    %347 = arith.mulf %342, %346 : vector<1x8xf32>
    %348 = arith.mulf %347, %3 : vector<1x8xf32>
    %cst_15 = arith.constant dense<0.000000e+00> : vector<1xf32>
    %349 = vector.multi_reduction <add>, %348, %cst_15 [1] : vector<1x8xf32> to vector<1xf32>
    %350 = vector.shape_cast %349 : vector<1xf32> to vector<1x1xf32>
    %351 = vector.broadcast %350 : vector<1x1xf32> to vector<1x10xf32>
    %352 = arith.mulf %351, %19 : vector<1x10xf32>
    %353 = arith.addf %308, %352 : vector<1x10xf32>
    %354 = vector.extract_strided_slice %5 {offsets = [0, 8], sizes = [1, 1], strides = [1, 1]} : vector<1x16xf32> to vector<1x1xf32>
    %355 = vector.broadcast %354 : vector<1x1xf32> to vector<1x32xf32>
    %356 = arith.mulf %355, %1 : vector<1x32xf32>
    %357 = arith.addf %2, %356 : vector<1x32xf32>
    %358 = vector.extract_strided_slice %347 {offsets = [0, 0], sizes = [1, 1], strides = [1, 1]} : vector<1x8xf32> to vector<1x1xf32>
    %359 = vector.broadcast %358 : vector<1x1xf32> to vector<1x32xf32>
    %360 = arith.mulf %359, %6 : vector<1x32xf32>
    %361 = vector.extract_strided_slice %347 {offsets = [0, 1], sizes = [1, 1], strides = [1, 1]} : vector<1x8xf32> to vector<1x1xf32>
    %362 = vector.broadcast %361 : vector<1x1xf32> to vector<1x32xf32>
    %363 = arith.mulf %362, %7 : vector<1x32xf32>
    %364 = vector.extract_strided_slice %347 {offsets = [0, 2], sizes = [1, 1], strides = [1, 1]} : vector<1x8xf32> to vector<1x1xf32>
    %365 = vector.broadcast %364 : vector<1x1xf32> to vector<1x32xf32>
    %366 = arith.mulf %365, %8 : vector<1x32xf32>
    %367 = vector.extract_strided_slice %347 {offsets = [0, 3], sizes = [1, 1], strides = [1, 1]} : vector<1x8xf32> to vector<1x1xf32>
    %368 = vector.broadcast %367 : vector<1x1xf32> to vector<1x32xf32>
    %369 = arith.mulf %368, %9 : vector<1x32xf32>
    %370 = vector.extract_strided_slice %347 {offsets = [0, 4], sizes = [1, 1], strides = [1, 1]} : vector<1x8xf32> to vector<1x1xf32>
    %371 = vector.broadcast %370 : vector<1x1xf32> to vector<1x32xf32>
    %372 = arith.mulf %371, %10 : vector<1x32xf32>
    %373 = arith.addf %360, %363 : vector<1x32xf32>
    %374 = arith.addf %366, %369 : vector<1x32xf32>
    %375 = arith.addf %373, %374 : vector<1x32xf32>
    %376 = arith.addf %375, %372 : vector<1x32xf32>
    %377 = arith.addf %357, %376 : vector<1x32xf32>
    %378 = arith.negf %377 : vector<1x32xf32>
    %379 = math.exp %378 : vector<1x32xf32>
    %cst_16 = arith.constant 1.000000e+00 : f32
    %380 = vector.broadcast %cst_16 : f32 to vector<1x32xf32>
    %381 = arith.addf %380, %379 : vector<1x32xf32>
    %382 = arith.divf %380, %381 : vector<1x32xf32>
    %383 = math.tanh %377 : vector<1x32xf32>
    %384 = vector.extract_strided_slice %382 {offsets = [0, 0], sizes = [1, 8], strides = [1, 1]} : vector<1x32xf32> to vector<1x8xf32>
    %385 = vector.extract_strided_slice %382 {offsets = [0, 8], sizes = [1, 8], strides = [1, 1]} : vector<1x32xf32> to vector<1x8xf32>
    %386 = vector.extract_strided_slice %383 {offsets = [0, 16], sizes = [1, 8], strides = [1, 1]} : vector<1x32xf32> to vector<1x8xf32>
    %387 = vector.extract_strided_slice %382 {offsets = [0, 24], sizes = [1, 8], strides = [1, 1]} : vector<1x32xf32> to vector<1x8xf32>
    %388 = arith.mulf %385, %345 : vector<1x8xf32>
    %389 = arith.mulf %384, %386 : vector<1x8xf32>
    %390 = arith.addf %388, %389 : vector<1x8xf32>
    %391 = math.tanh %390 : vector<1x8xf32>
    %392 = arith.mulf %387, %391 : vector<1x8xf32>
    %393 = arith.mulf %392, %3 : vector<1x8xf32>
    %cst_17 = arith.constant dense<0.000000e+00> : vector<1xf32>
    %394 = vector.multi_reduction <add>, %393, %cst_17 [1] : vector<1x8xf32> to vector<1xf32>
    %395 = vector.shape_cast %394 : vector<1xf32> to vector<1x1xf32>
    %396 = vector.broadcast %395 : vector<1x1xf32> to vector<1x10xf32>
    %397 = arith.mulf %396, %23 : vector<1x10xf32>
    %398 = arith.addf %353, %397 : vector<1x10xf32>
    %399 = vector.extract_strided_slice %5 {offsets = [0, 9], sizes = [1, 1], strides = [1, 1]} : vector<1x16xf32> to vector<1x1xf32>
    %400 = vector.broadcast %399 : vector<1x1xf32> to vector<1x32xf32>
    %401 = arith.mulf %400, %1 : vector<1x32xf32>
    %402 = arith.addf %2, %401 : vector<1x32xf32>
    %403 = vector.extract_strided_slice %392 {offsets = [0, 0], sizes = [1, 1], strides = [1, 1]} : vector<1x8xf32> to vector<1x1xf32>
    %404 = vector.broadcast %403 : vector<1x1xf32> to vector<1x32xf32>
    %405 = arith.mulf %404, %6 : vector<1x32xf32>
    %406 = vector.extract_strided_slice %392 {offsets = [0, 1], sizes = [1, 1], strides = [1, 1]} : vector<1x8xf32> to vector<1x1xf32>
    %407 = vector.broadcast %406 : vector<1x1xf32> to vector<1x32xf32>
    %408 = arith.mulf %407, %7 : vector<1x32xf32>
    %409 = vector.extract_strided_slice %392 {offsets = [0, 2], sizes = [1, 1], strides = [1, 1]} : vector<1x8xf32> to vector<1x1xf32>
    %410 = vector.broadcast %409 : vector<1x1xf32> to vector<1x32xf32>
    %411 = arith.mulf %410, %8 : vector<1x32xf32>
    %412 = vector.extract_strided_slice %392 {offsets = [0, 3], sizes = [1, 1], strides = [1, 1]} : vector<1x8xf32> to vector<1x1xf32>
    %413 = vector.broadcast %412 : vector<1x1xf32> to vector<1x32xf32>
    %414 = arith.mulf %413, %9 : vector<1x32xf32>
    %415 = vector.extract_strided_slice %392 {offsets = [0, 4], sizes = [1, 1], strides = [1, 1]} : vector<1x8xf32> to vector<1x1xf32>
    %416 = vector.broadcast %415 : vector<1x1xf32> to vector<1x32xf32>
    %417 = arith.mulf %416, %10 : vector<1x32xf32>
    %418 = arith.addf %405, %408 : vector<1x32xf32>
    %419 = arith.addf %411, %414 : vector<1x32xf32>
    %420 = arith.addf %418, %419 : vector<1x32xf32>
    %421 = arith.addf %420, %417 : vector<1x32xf32>
    %422 = arith.addf %402, %421 : vector<1x32xf32>
    %423 = arith.negf %422 : vector<1x32xf32>
    %424 = math.exp %423 : vector<1x32xf32>
    %cst_18 = arith.constant 1.000000e+00 : f32
    %425 = vector.broadcast %cst_18 : f32 to vector<1x32xf32>
    %426 = arith.addf %425, %424 : vector<1x32xf32>
    %427 = arith.divf %425, %426 : vector<1x32xf32>
    %428 = math.tanh %422 : vector<1x32xf32>
    %429 = vector.extract_strided_slice %427 {offsets = [0, 0], sizes = [1, 8], strides = [1, 1]} : vector<1x32xf32> to vector<1x8xf32>
    %430 = vector.extract_strided_slice %427 {offsets = [0, 8], sizes = [1, 8], strides = [1, 1]} : vector<1x32xf32> to vector<1x8xf32>
    %431 = vector.extract_strided_slice %428 {offsets = [0, 16], sizes = [1, 8], strides = [1, 1]} : vector<1x32xf32> to vector<1x8xf32>
    %432 = vector.extract_strided_slice %427 {offsets = [0, 24], sizes = [1, 8], strides = [1, 1]} : vector<1x32xf32> to vector<1x8xf32>
    %433 = arith.mulf %430, %390 : vector<1x8xf32>
    %434 = arith.mulf %429, %431 : vector<1x8xf32>
    %435 = arith.addf %433, %434 : vector<1x8xf32>
    %436 = math.tanh %435 : vector<1x8xf32>
    %437 = arith.mulf %432, %436 : vector<1x8xf32>
    %438 = arith.mulf %437, %3 : vector<1x8xf32>
    %cst_19 = arith.constant dense<0.000000e+00> : vector<1xf32>
    %439 = vector.multi_reduction <add>, %438, %cst_19 [1] : vector<1x8xf32> to vector<1xf32>
    %440 = vector.shape_cast %439 : vector<1xf32> to vector<1x1xf32>
    %441 = vector.broadcast %440 : vector<1x1xf32> to vector<1x10xf32>
    %442 = arith.mulf %441, %27 : vector<1x10xf32>
    %443 = arith.addf %398, %442 : vector<1x10xf32>
    %444 = vector.extract_strided_slice %5 {offsets = [0, 10], sizes = [1, 1], strides = [1, 1]} : vector<1x16xf32> to vector<1x1xf32>
    %445 = vector.broadcast %444 : vector<1x1xf32> to vector<1x32xf32>
    %446 = arith.mulf %445, %1 : vector<1x32xf32>
    %447 = arith.addf %2, %446 : vector<1x32xf32>
    %448 = vector.extract_strided_slice %437 {offsets = [0, 0], sizes = [1, 1], strides = [1, 1]} : vector<1x8xf32> to vector<1x1xf32>
    %449 = vector.broadcast %448 : vector<1x1xf32> to vector<1x32xf32>
    %450 = arith.mulf %449, %6 : vector<1x32xf32>
    %451 = vector.extract_strided_slice %437 {offsets = [0, 1], sizes = [1, 1], strides = [1, 1]} : vector<1x8xf32> to vector<1x1xf32>
    %452 = vector.broadcast %451 : vector<1x1xf32> to vector<1x32xf32>
    %453 = arith.mulf %452, %7 : vector<1x32xf32>
    %454 = vector.extract_strided_slice %437 {offsets = [0, 2], sizes = [1, 1], strides = [1, 1]} : vector<1x8xf32> to vector<1x1xf32>
    %455 = vector.broadcast %454 : vector<1x1xf32> to vector<1x32xf32>
    %456 = arith.mulf %455, %8 : vector<1x32xf32>
    %457 = vector.extract_strided_slice %437 {offsets = [0, 3], sizes = [1, 1], strides = [1, 1]} : vector<1x8xf32> to vector<1x1xf32>
    %458 = vector.broadcast %457 : vector<1x1xf32> to vector<1x32xf32>
    %459 = arith.mulf %458, %9 : vector<1x32xf32>
    %460 = vector.extract_strided_slice %437 {offsets = [0, 4], sizes = [1, 1], strides = [1, 1]} : vector<1x8xf32> to vector<1x1xf32>
    %461 = vector.broadcast %460 : vector<1x1xf32> to vector<1x32xf32>
    %462 = arith.mulf %461, %10 : vector<1x32xf32>
    %463 = arith.addf %450, %453 : vector<1x32xf32>
    %464 = arith.addf %456, %459 : vector<1x32xf32>
    %465 = arith.addf %463, %464 : vector<1x32xf32>
    %466 = arith.addf %465, %462 : vector<1x32xf32>
    %467 = arith.addf %447, %466 : vector<1x32xf32>
    %468 = arith.negf %467 : vector<1x32xf32>
    %469 = math.exp %468 : vector<1x32xf32>
    %cst_20 = arith.constant 1.000000e+00 : f32
    %470 = vector.broadcast %cst_20 : f32 to vector<1x32xf32>
    %471 = arith.addf %470, %469 : vector<1x32xf32>
    %472 = arith.divf %470, %471 : vector<1x32xf32>
    %473 = math.tanh %467 : vector<1x32xf32>
    %474 = vector.extract_strided_slice %472 {offsets = [0, 0], sizes = [1, 8], strides = [1, 1]} : vector<1x32xf32> to vector<1x8xf32>
    %475 = vector.extract_strided_slice %472 {offsets = [0, 8], sizes = [1, 8], strides = [1, 1]} : vector<1x32xf32> to vector<1x8xf32>
    %476 = vector.extract_strided_slice %473 {offsets = [0, 16], sizes = [1, 8], strides = [1, 1]} : vector<1x32xf32> to vector<1x8xf32>
    %477 = vector.extract_strided_slice %472 {offsets = [0, 24], sizes = [1, 8], strides = [1, 1]} : vector<1x32xf32> to vector<1x8xf32>
    %478 = arith.mulf %475, %435 : vector<1x8xf32>
    %479 = arith.mulf %474, %476 : vector<1x8xf32>
    %480 = arith.addf %478, %479 : vector<1x8xf32>
    %481 = math.tanh %480 : vector<1x8xf32>
    %482 = arith.mulf %477, %481 : vector<1x8xf32>
    %483 = arith.mulf %482, %3 : vector<1x8xf32>
    %cst_21 = arith.constant dense<0.000000e+00> : vector<1xf32>
    %484 = vector.multi_reduction <add>, %483, %cst_21 [1] : vector<1x8xf32> to vector<1xf32>
    %485 = vector.shape_cast %484 : vector<1xf32> to vector<1x1xf32>
    %486 = vector.broadcast %485 : vector<1x1xf32> to vector<1x10xf32>
    %487 = arith.mulf %486, %31 : vector<1x10xf32>
    %488 = arith.addf %443, %487 : vector<1x10xf32>
    %489 = vector.extract_strided_slice %5 {offsets = [0, 11], sizes = [1, 1], strides = [1, 1]} : vector<1x16xf32> to vector<1x1xf32>
    %490 = vector.broadcast %489 : vector<1x1xf32> to vector<1x32xf32>
    %491 = arith.mulf %490, %1 : vector<1x32xf32>
    %492 = arith.addf %2, %491 : vector<1x32xf32>
    %493 = vector.extract_strided_slice %482 {offsets = [0, 0], sizes = [1, 1], strides = [1, 1]} : vector<1x8xf32> to vector<1x1xf32>
    %494 = vector.broadcast %493 : vector<1x1xf32> to vector<1x32xf32>
    %495 = arith.mulf %494, %6 : vector<1x32xf32>
    %496 = vector.extract_strided_slice %482 {offsets = [0, 1], sizes = [1, 1], strides = [1, 1]} : vector<1x8xf32> to vector<1x1xf32>
    %497 = vector.broadcast %496 : vector<1x1xf32> to vector<1x32xf32>
    %498 = arith.mulf %497, %7 : vector<1x32xf32>
    %499 = vector.extract_strided_slice %482 {offsets = [0, 2], sizes = [1, 1], strides = [1, 1]} : vector<1x8xf32> to vector<1x1xf32>
    %500 = vector.broadcast %499 : vector<1x1xf32> to vector<1x32xf32>
    %501 = arith.mulf %500, %8 : vector<1x32xf32>
    %502 = vector.extract_strided_slice %482 {offsets = [0, 3], sizes = [1, 1], strides = [1, 1]} : vector<1x8xf32> to vector<1x1xf32>
    %503 = vector.broadcast %502 : vector<1x1xf32> to vector<1x32xf32>
    %504 = arith.mulf %503, %9 : vector<1x32xf32>
    %505 = vector.extract_strided_slice %482 {offsets = [0, 4], sizes = [1, 1], strides = [1, 1]} : vector<1x8xf32> to vector<1x1xf32>
    %506 = vector.broadcast %505 : vector<1x1xf32> to vector<1x32xf32>
    %507 = arith.mulf %506, %10 : vector<1x32xf32>
    %508 = arith.addf %495, %498 : vector<1x32xf32>
    %509 = arith.addf %501, %504 : vector<1x32xf32>
    %510 = arith.addf %508, %509 : vector<1x32xf32>
    %511 = arith.addf %510, %507 : vector<1x32xf32>
    %512 = arith.addf %492, %511 : vector<1x32xf32>
    %513 = arith.negf %512 : vector<1x32xf32>
    %514 = math.exp %513 : vector<1x32xf32>
    %cst_22 = arith.constant 1.000000e+00 : f32
    %515 = vector.broadcast %cst_22 : f32 to vector<1x32xf32>
    %516 = arith.addf %515, %514 : vector<1x32xf32>
    %517 = arith.divf %515, %516 : vector<1x32xf32>
    %518 = math.tanh %512 : vector<1x32xf32>
    %519 = vector.extract_strided_slice %517 {offsets = [0, 0], sizes = [1, 8], strides = [1, 1]} : vector<1x32xf32> to vector<1x8xf32>
    %520 = vector.extract_strided_slice %517 {offsets = [0, 8], sizes = [1, 8], strides = [1, 1]} : vector<1x32xf32> to vector<1x8xf32>
    %521 = vector.extract_strided_slice %518 {offsets = [0, 16], sizes = [1, 8], strides = [1, 1]} : vector<1x32xf32> to vector<1x8xf32>
    %522 = vector.extract_strided_slice %517 {offsets = [0, 24], sizes = [1, 8], strides = [1, 1]} : vector<1x32xf32> to vector<1x8xf32>
    %523 = arith.mulf %520, %480 : vector<1x8xf32>
    %524 = arith.mulf %519, %521 : vector<1x8xf32>
    %525 = arith.addf %523, %524 : vector<1x8xf32>
    %526 = math.tanh %525 : vector<1x8xf32>
    %527 = arith.mulf %522, %526 : vector<1x8xf32>
    %528 = arith.mulf %527, %3 : vector<1x8xf32>
    %cst_23 = arith.constant dense<0.000000e+00> : vector<1xf32>
    %529 = vector.multi_reduction <add>, %528, %cst_23 [1] : vector<1x8xf32> to vector<1xf32>
    %530 = vector.shape_cast %529 : vector<1xf32> to vector<1x1xf32>
    %531 = vector.broadcast %530 : vector<1x1xf32> to vector<1x10xf32>
    %532 = arith.mulf %531, %35 : vector<1x10xf32>
    %533 = arith.addf %488, %532 : vector<1x10xf32>
    %534 = vector.extract_strided_slice %5 {offsets = [0, 12], sizes = [1, 1], strides = [1, 1]} : vector<1x16xf32> to vector<1x1xf32>
    %535 = vector.broadcast %534 : vector<1x1xf32> to vector<1x32xf32>
    %536 = arith.mulf %535, %1 : vector<1x32xf32>
    %537 = arith.addf %2, %536 : vector<1x32xf32>
    %538 = vector.extract_strided_slice %527 {offsets = [0, 0], sizes = [1, 1], strides = [1, 1]} : vector<1x8xf32> to vector<1x1xf32>
    %539 = vector.broadcast %538 : vector<1x1xf32> to vector<1x32xf32>
    %540 = arith.mulf %539, %6 : vector<1x32xf32>
    %541 = vector.extract_strided_slice %527 {offsets = [0, 1], sizes = [1, 1], strides = [1, 1]} : vector<1x8xf32> to vector<1x1xf32>
    %542 = vector.broadcast %541 : vector<1x1xf32> to vector<1x32xf32>
    %543 = arith.mulf %542, %7 : vector<1x32xf32>
    %544 = vector.extract_strided_slice %527 {offsets = [0, 2], sizes = [1, 1], strides = [1, 1]} : vector<1x8xf32> to vector<1x1xf32>
    %545 = vector.broadcast %544 : vector<1x1xf32> to vector<1x32xf32>
    %546 = arith.mulf %545, %8 : vector<1x32xf32>
    %547 = vector.extract_strided_slice %527 {offsets = [0, 3], sizes = [1, 1], strides = [1, 1]} : vector<1x8xf32> to vector<1x1xf32>
    %548 = vector.broadcast %547 : vector<1x1xf32> to vector<1x32xf32>
    %549 = arith.mulf %548, %9 : vector<1x32xf32>
    %550 = vector.extract_strided_slice %527 {offsets = [0, 4], sizes = [1, 1], strides = [1, 1]} : vector<1x8xf32> to vector<1x1xf32>
    %551 = vector.broadcast %550 : vector<1x1xf32> to vector<1x32xf32>
    %552 = arith.mulf %551, %10 : vector<1x32xf32>
    %553 = arith.addf %540, %543 : vector<1x32xf32>
    %554 = arith.addf %546, %549 : vector<1x32xf32>
    %555 = arith.addf %553, %554 : vector<1x32xf32>
    %556 = arith.addf %555, %552 : vector<1x32xf32>
    %557 = arith.addf %537, %556 : vector<1x32xf32>
    %558 = arith.negf %557 : vector<1x32xf32>
    %559 = math.exp %558 : vector<1x32xf32>
    %cst_24 = arith.constant 1.000000e+00 : f32
    %560 = vector.broadcast %cst_24 : f32 to vector<1x32xf32>
    %561 = arith.addf %560, %559 : vector<1x32xf32>
    %562 = arith.divf %560, %561 : vector<1x32xf32>
    %563 = math.tanh %557 : vector<1x32xf32>
    %564 = vector.extract_strided_slice %562 {offsets = [0, 0], sizes = [1, 8], strides = [1, 1]} : vector<1x32xf32> to vector<1x8xf32>
    %565 = vector.extract_strided_slice %562 {offsets = [0, 8], sizes = [1, 8], strides = [1, 1]} : vector<1x32xf32> to vector<1x8xf32>
    %566 = vector.extract_strided_slice %563 {offsets = [0, 16], sizes = [1, 8], strides = [1, 1]} : vector<1x32xf32> to vector<1x8xf32>
    %567 = vector.extract_strided_slice %562 {offsets = [0, 24], sizes = [1, 8], strides = [1, 1]} : vector<1x32xf32> to vector<1x8xf32>
    %568 = arith.mulf %565, %525 : vector<1x8xf32>
    %569 = arith.mulf %564, %566 : vector<1x8xf32>
    %570 = arith.addf %568, %569 : vector<1x8xf32>
    %571 = math.tanh %570 : vector<1x8xf32>
    %572 = arith.mulf %567, %571 : vector<1x8xf32>
    %573 = arith.mulf %572, %3 : vector<1x8xf32>
    %cst_25 = arith.constant dense<0.000000e+00> : vector<1xf32>
    %574 = vector.multi_reduction <add>, %573, %cst_25 [1] : vector<1x8xf32> to vector<1xf32>
    %575 = vector.shape_cast %574 : vector<1xf32> to vector<1x1xf32>
    %576 = vector.broadcast %575 : vector<1x1xf32> to vector<1x10xf32>
    %577 = arith.mulf %576, %39 : vector<1x10xf32>
    %578 = arith.addf %533, %577 : vector<1x10xf32>
    %579 = vector.extract_strided_slice %5 {offsets = [0, 13], sizes = [1, 1], strides = [1, 1]} : vector<1x16xf32> to vector<1x1xf32>
    %580 = vector.broadcast %579 : vector<1x1xf32> to vector<1x32xf32>
    %581 = arith.mulf %580, %1 : vector<1x32xf32>
    %582 = arith.addf %2, %581 : vector<1x32xf32>
    %583 = vector.extract_strided_slice %572 {offsets = [0, 0], sizes = [1, 1], strides = [1, 1]} : vector<1x8xf32> to vector<1x1xf32>
    %584 = vector.broadcast %583 : vector<1x1xf32> to vector<1x32xf32>
    %585 = arith.mulf %584, %6 : vector<1x32xf32>
    %586 = vector.extract_strided_slice %572 {offsets = [0, 1], sizes = [1, 1], strides = [1, 1]} : vector<1x8xf32> to vector<1x1xf32>
    %587 = vector.broadcast %586 : vector<1x1xf32> to vector<1x32xf32>
    %588 = arith.mulf %587, %7 : vector<1x32xf32>
    %589 = vector.extract_strided_slice %572 {offsets = [0, 2], sizes = [1, 1], strides = [1, 1]} : vector<1x8xf32> to vector<1x1xf32>
    %590 = vector.broadcast %589 : vector<1x1xf32> to vector<1x32xf32>
    %591 = arith.mulf %590, %8 : vector<1x32xf32>
    %592 = vector.extract_strided_slice %572 {offsets = [0, 3], sizes = [1, 1], strides = [1, 1]} : vector<1x8xf32> to vector<1x1xf32>
    %593 = vector.broadcast %592 : vector<1x1xf32> to vector<1x32xf32>
    %594 = arith.mulf %593, %9 : vector<1x32xf32>
    %595 = vector.extract_strided_slice %572 {offsets = [0, 4], sizes = [1, 1], strides = [1, 1]} : vector<1x8xf32> to vector<1x1xf32>
    %596 = vector.broadcast %595 : vector<1x1xf32> to vector<1x32xf32>
    %597 = arith.mulf %596, %10 : vector<1x32xf32>
    %598 = arith.addf %585, %588 : vector<1x32xf32>
    %599 = arith.addf %591, %594 : vector<1x32xf32>
    %600 = arith.addf %598, %599 : vector<1x32xf32>
    %601 = arith.addf %600, %597 : vector<1x32xf32>
    %602 = arith.addf %582, %601 : vector<1x32xf32>
    %603 = arith.negf %602 : vector<1x32xf32>
    %604 = math.exp %603 : vector<1x32xf32>
    %cst_26 = arith.constant 1.000000e+00 : f32
    %605 = vector.broadcast %cst_26 : f32 to vector<1x32xf32>
    %606 = arith.addf %605, %604 : vector<1x32xf32>
    %607 = arith.divf %605, %606 : vector<1x32xf32>
    %608 = math.tanh %602 : vector<1x32xf32>
    %609 = vector.extract_strided_slice %607 {offsets = [0, 0], sizes = [1, 8], strides = [1, 1]} : vector<1x32xf32> to vector<1x8xf32>
    %610 = vector.extract_strided_slice %607 {offsets = [0, 8], sizes = [1, 8], strides = [1, 1]} : vector<1x32xf32> to vector<1x8xf32>
    %611 = vector.extract_strided_slice %608 {offsets = [0, 16], sizes = [1, 8], strides = [1, 1]} : vector<1x32xf32> to vector<1x8xf32>
    %612 = vector.extract_strided_slice %607 {offsets = [0, 24], sizes = [1, 8], strides = [1, 1]} : vector<1x32xf32> to vector<1x8xf32>
    %613 = arith.mulf %610, %570 : vector<1x8xf32>
    %614 = arith.mulf %609, %611 : vector<1x8xf32>
    %615 = arith.addf %613, %614 : vector<1x8xf32>
    %616 = math.tanh %615 : vector<1x8xf32>
    %617 = arith.mulf %612, %616 : vector<1x8xf32>
    %618 = arith.mulf %617, %3 : vector<1x8xf32>
    %cst_27 = arith.constant dense<0.000000e+00> : vector<1xf32>
    %619 = vector.multi_reduction <add>, %618, %cst_27 [1] : vector<1x8xf32> to vector<1xf32>
    %620 = vector.shape_cast %619 : vector<1xf32> to vector<1x1xf32>
    %621 = vector.broadcast %620 : vector<1x1xf32> to vector<1x10xf32>
    %622 = arith.mulf %621, %43 : vector<1x10xf32>
    %623 = arith.addf %578, %622 : vector<1x10xf32>
    %624 = vector.extract_strided_slice %5 {offsets = [0, 14], sizes = [1, 1], strides = [1, 1]} : vector<1x16xf32> to vector<1x1xf32>
    %625 = vector.broadcast %624 : vector<1x1xf32> to vector<1x32xf32>
    %626 = arith.mulf %625, %1 : vector<1x32xf32>
    %627 = arith.addf %2, %626 : vector<1x32xf32>
    %628 = vector.extract_strided_slice %617 {offsets = [0, 0], sizes = [1, 1], strides = [1, 1]} : vector<1x8xf32> to vector<1x1xf32>
    %629 = vector.broadcast %628 : vector<1x1xf32> to vector<1x32xf32>
    %630 = arith.mulf %629, %6 : vector<1x32xf32>
    %631 = vector.extract_strided_slice %617 {offsets = [0, 1], sizes = [1, 1], strides = [1, 1]} : vector<1x8xf32> to vector<1x1xf32>
    %632 = vector.broadcast %631 : vector<1x1xf32> to vector<1x32xf32>
    %633 = arith.mulf %632, %7 : vector<1x32xf32>
    %634 = vector.extract_strided_slice %617 {offsets = [0, 2], sizes = [1, 1], strides = [1, 1]} : vector<1x8xf32> to vector<1x1xf32>
    %635 = vector.broadcast %634 : vector<1x1xf32> to vector<1x32xf32>
    %636 = arith.mulf %635, %8 : vector<1x32xf32>
    %637 = vector.extract_strided_slice %617 {offsets = [0, 3], sizes = [1, 1], strides = [1, 1]} : vector<1x8xf32> to vector<1x1xf32>
    %638 = vector.broadcast %637 : vector<1x1xf32> to vector<1x32xf32>
    %639 = arith.mulf %638, %9 : vector<1x32xf32>
    %640 = vector.extract_strided_slice %617 {offsets = [0, 4], sizes = [1, 1], strides = [1, 1]} : vector<1x8xf32> to vector<1x1xf32>
    %641 = vector.broadcast %640 : vector<1x1xf32> to vector<1x32xf32>
    %642 = arith.mulf %641, %10 : vector<1x32xf32>
    %643 = arith.addf %630, %633 : vector<1x32xf32>
    %644 = arith.addf %636, %639 : vector<1x32xf32>
    %645 = arith.addf %643, %644 : vector<1x32xf32>
    %646 = arith.addf %645, %642 : vector<1x32xf32>
    %647 = arith.addf %627, %646 : vector<1x32xf32>
    %648 = arith.negf %647 : vector<1x32xf32>
    %649 = math.exp %648 : vector<1x32xf32>
    %cst_28 = arith.constant 1.000000e+00 : f32
    %650 = vector.broadcast %cst_28 : f32 to vector<1x32xf32>
    %651 = arith.addf %650, %649 : vector<1x32xf32>
    %652 = arith.divf %650, %651 : vector<1x32xf32>
    %653 = math.tanh %647 : vector<1x32xf32>
    %654 = vector.extract_strided_slice %652 {offsets = [0, 0], sizes = [1, 8], strides = [1, 1]} : vector<1x32xf32> to vector<1x8xf32>
    %655 = vector.extract_strided_slice %652 {offsets = [0, 8], sizes = [1, 8], strides = [1, 1]} : vector<1x32xf32> to vector<1x8xf32>
    %656 = vector.extract_strided_slice %653 {offsets = [0, 16], sizes = [1, 8], strides = [1, 1]} : vector<1x32xf32> to vector<1x8xf32>
    %657 = vector.extract_strided_slice %652 {offsets = [0, 24], sizes = [1, 8], strides = [1, 1]} : vector<1x32xf32> to vector<1x8xf32>
    %658 = arith.mulf %655, %615 : vector<1x8xf32>
    %659 = arith.mulf %654, %656 : vector<1x8xf32>
    %660 = arith.addf %658, %659 : vector<1x8xf32>
    %661 = math.tanh %660 : vector<1x8xf32>
    %662 = arith.mulf %657, %661 : vector<1x8xf32>
    %663 = arith.mulf %662, %3 : vector<1x8xf32>
    %cst_29 = arith.constant dense<0.000000e+00> : vector<1xf32>
    %664 = vector.multi_reduction <add>, %663, %cst_29 [1] : vector<1x8xf32> to vector<1xf32>
    %665 = vector.shape_cast %664 : vector<1xf32> to vector<1x1xf32>
    %666 = vector.broadcast %665 : vector<1x1xf32> to vector<1x10xf32>
    %667 = arith.mulf %666, %47 : vector<1x10xf32>
    %668 = arith.addf %623, %667 : vector<1x10xf32>
    %669 = vector.extract_strided_slice %5 {offsets = [0, 15], sizes = [1, 1], strides = [1, 1]} : vector<1x16xf32> to vector<1x1xf32>
    %670 = vector.broadcast %669 : vector<1x1xf32> to vector<1x32xf32>
    %671 = arith.mulf %670, %1 : vector<1x32xf32>
    %672 = arith.addf %2, %671 : vector<1x32xf32>
    %673 = vector.extract_strided_slice %662 {offsets = [0, 0], sizes = [1, 1], strides = [1, 1]} : vector<1x8xf32> to vector<1x1xf32>
    %674 = vector.broadcast %673 : vector<1x1xf32> to vector<1x32xf32>
    %675 = arith.mulf %674, %6 : vector<1x32xf32>
    %676 = vector.extract_strided_slice %662 {offsets = [0, 1], sizes = [1, 1], strides = [1, 1]} : vector<1x8xf32> to vector<1x1xf32>
    %677 = vector.broadcast %676 : vector<1x1xf32> to vector<1x32xf32>
    %678 = arith.mulf %677, %7 : vector<1x32xf32>
    %679 = vector.extract_strided_slice %662 {offsets = [0, 2], sizes = [1, 1], strides = [1, 1]} : vector<1x8xf32> to vector<1x1xf32>
    %680 = vector.broadcast %679 : vector<1x1xf32> to vector<1x32xf32>
    %681 = arith.mulf %680, %8 : vector<1x32xf32>
    %682 = vector.extract_strided_slice %662 {offsets = [0, 3], sizes = [1, 1], strides = [1, 1]} : vector<1x8xf32> to vector<1x1xf32>
    %683 = vector.broadcast %682 : vector<1x1xf32> to vector<1x32xf32>
    %684 = arith.mulf %683, %9 : vector<1x32xf32>
    %685 = vector.extract_strided_slice %662 {offsets = [0, 4], sizes = [1, 1], strides = [1, 1]} : vector<1x8xf32> to vector<1x1xf32>
    %686 = vector.broadcast %685 : vector<1x1xf32> to vector<1x32xf32>
    %687 = arith.mulf %686, %10 : vector<1x32xf32>
    %688 = arith.addf %675, %678 : vector<1x32xf32>
    %689 = arith.addf %681, %684 : vector<1x32xf32>
    %690 = arith.addf %688, %689 : vector<1x32xf32>
    %691 = arith.addf %690, %687 : vector<1x32xf32>
    %692 = arith.addf %672, %691 : vector<1x32xf32>
    %693 = arith.negf %692 : vector<1x32xf32>
    %694 = math.exp %693 : vector<1x32xf32>
    %cst_30 = arith.constant 1.000000e+00 : f32
    %695 = vector.broadcast %cst_30 : f32 to vector<1x32xf32>
    %696 = arith.addf %695, %694 : vector<1x32xf32>
    %697 = arith.divf %695, %696 : vector<1x32xf32>
    %698 = math.tanh %692 : vector<1x32xf32>
    %699 = vector.extract_strided_slice %697 {offsets = [0, 0], sizes = [1, 8], strides = [1, 1]} : vector<1x32xf32> to vector<1x8xf32>
    %700 = vector.extract_strided_slice %697 {offsets = [0, 8], sizes = [1, 8], strides = [1, 1]} : vector<1x32xf32> to vector<1x8xf32>
    %701 = vector.extract_strided_slice %698 {offsets = [0, 16], sizes = [1, 8], strides = [1, 1]} : vector<1x32xf32> to vector<1x8xf32>
    %702 = vector.extract_strided_slice %697 {offsets = [0, 24], sizes = [1, 8], strides = [1, 1]} : vector<1x32xf32> to vector<1x8xf32>
    %703 = arith.mulf %700, %660 : vector<1x8xf32>
    %704 = arith.mulf %699, %701 : vector<1x8xf32>
    %705 = arith.addf %703, %704 : vector<1x8xf32>
    %706 = math.tanh %705 : vector<1x8xf32>
    %707 = arith.mulf %702, %706 : vector<1x8xf32>
    %708 = arith.mulf %707, %3 : vector<1x8xf32>
    %cst_31 = arith.constant dense<0.000000e+00> : vector<1xf32>
    %709 = vector.multi_reduction <add>, %708, %cst_31 [1] : vector<1x8xf32> to vector<1xf32>
    %710 = vector.shape_cast %709 : vector<1xf32> to vector<1x1xf32>
    %711 = vector.broadcast %710 : vector<1x1xf32> to vector<1x10xf32>
    %712 = arith.mulf %711, %51 : vector<1x10xf32>
    %713 = arith.addf %668, %712 : vector<1x10xf32>
    %714 = vector.broadcast %4 : vector<1x1xf32> to vector<1x10xf32>
    %715 = arith.addf %713, %714 : vector<1x10xf32>
    %716 = arith.negf %715 : vector<1x10xf32>
    %717 = math.exp %716 : vector<1x10xf32>
    %cst_32 = arith.constant 1.000000e+00 : f32
    %718 = vector.broadcast %cst_32 : f32 to vector<1x10xf32>
    %719 = arith.addf %718, %717 : vector<1x10xf32>
    %720 = arith.divf %718, %719 : vector<1x10xf32>
    %c0_33 = arith.constant 0 : index
    %c0_34 = arith.constant 0 : index
    %721 = vector.load %arg1[%c0_33, %c0_34] : memref<1x10xf32, #tpu.memory_space<vmem>>, vector<1x10xf32>
    tpu.vector_store %arg1[%c0_33, %c0_34], %720 {strides = array<i32>} : memref<1x10xf32, #tpu.memory_space<vmem>>, vector<1x10xf32>,
    return
  }
}

</mosaic_0001>

<llo_original>
// kernel: tpu_custom_call.1
$region0: #{tpu_custom_call.1}
  #allocation0 [shape = 'u32[]', space=smem, size = 0x4, offset = 0x4, fixed_abs, tag = 'smem constant byte address 0x4 - core index']
  #allocation1 [shape = 'u32[72,128]{1,0:T(1,128)}', space=vmem, size = 0x9000, scoped, tag = 'internal scratch']
  %s0 = inlined_call_operand.hbm [shape: f32[8,128], index: 0, kind: input, shape index: {}]
  %s1 = inlined_call_operand.hbm [shape: f32[1,10], index: 1, kind: output, shape index: {}]
  %s2 = sld [smem:[#allocation0]]
  $region18: #{tpu_custom_call.1} parent=0
    _
  %s4 = ssub.s32 1, %s2
  %s5 = scalar_select 0, %s4, %s2
  $region1: #{tpu_custom_call.1} parent=0
    #allocation2 [shape = 'u8[4096]{0}', space=vmem, size = 0x1000, scoped, tag = 'input window, operand 0, single buffered']
    #allocation3 [shape = 's32[1]{0}', space=sflag, size = 0x4, scoped, tag = 'scoped memory for tpu_custom_call.1']
    #allocation4 [shape = 's32[1]{0}', space=sflag, size = 0x4, scoped, tag = 'scoped memory for tpu_custom_call.1']
    #allocation5 [shape = 'u8[512]{0}', space=vmem, size = 0x400, scoped, tag = 'output window, operand 0, single buffered']
    %6 = vsyncpa [#allocation3], 0
    %7 = vsyncpa [#allocation4], 0
    // Predicated region
    $region2: #{tpu_custom_call.1} parent=1 // pred_check
      _
    $region3: #{tpu_custom_call.1} parent=1 // pred_check_branch
      %9 = sbr.rel (0) target = $region5
    $region4: #{tpu_custom_call.1} parent=1 // pred_region
      %11 = vsyncadd [#allocation3], 0
      %s13 = sshll.u32 %s0, 4
      %s14 = int_to_ptr.hbm [resolvable:$true] %s13
      %s15 = sshll.u32 [#allocation2], 4
      %s16 = int_to_ptr.vmem [resolvable:$true] %s15
      %18 = dma.hbm_to_vmem [thread:$0]  %s14, 128, %s16, [#allocation3]
    $region5: #{tpu_custom_call.1} parent=1 // pred_fallthru
      _
    // Predicated region
    $region6: #{tpu_custom_call.1} parent=1 // pred_check
      _
    $region7: #{tpu_custom_call.1} parent=1 // pred_check_branch
      %20 = sbr.rel (0) target = $region9
    $region8: #{tpu_custom_call.1} parent=1 // pred_region
      %22 = dma.done [#allocation3], 128
    $region9: #{tpu_custom_call.1} parent=1 // pred_fallthru
      _
    %v23 = vld [vmem:[#allocation2] sm:$0xff]
    %v24 = vld [vmem:[#allocation2] sm:$0x1]
    %v25 = vld [vmem:[#allocation2 + $0x1] sm:$0x1]
    %v26 = vld [vmem:[#allocation2 + $0x2] sm:$0x1]
    %v27 = vlaneseq
    %v28 = vand.u32 %v27, 127
    %vm29 = vcmp.eq.s32.totalorder %v28, 0
    %v30 = vsel %vm29, 1, 0
    %v31 = vcvt.s32.f32 %v30
    %vm32 = vcmp.eq.s32.totalorder %v28, 1
    %v33 = vsel %vm32, 1, 0
    %v34 = vcvt.s32.f32 %v33
    %vm35 = vcmp.eq.s32.totalorder %v28, 2
    %v36 = vsel %vm35, 1, 0
    %v37 = vcvt.s32.f32 %v36
    %vm38 = vcmp.eq.s32.totalorder %v28, 3
    %v39 = vsel %vm38, 1, 0
    %v40 = vcvt.s32.f32 %v39
    %vm41 = vcmp.eq.s32.totalorder %v28, 4
    %v42 = vsel %vm41, 1, 0
    %v43 = vcvt.s32.f32 %v42
    %vm44 = vcmp.eq.s32.totalorder %v28, 5
    %v45 = vsel %vm44, 1, 0
    %v46 = vcvt.s32.f32 %v45
    %vm47 = vcmp.eq.s32.totalorder %v28, 6
    %v48 = vsel %vm47, 1, 0
    %v49 = vcvt.s32.f32 %v48
    %vm50 = vcmp.eq.s32.totalorder %v28, 7
    %v51 = vsel %vm50, 1, 0
    %v52 = vcvt.s32.f32 %v51
    %vm53 = vcmp.eq.s32.totalorder %v28, 8
    %v54 = vsel %vm53, 1, 0
    %v55 = vcvt.s32.f32 %v54
    %vm56 = vcmp.eq.s32.totalorder %v28, 9
    %v57 = vsel %vm56, 1, 0
    %v58 = vcvt.s32.f32 %v57
    %60 = vset.pattern.permute.xlu0 96
    %61 = vperm.xlu0 %60, %v24
    %v62 = vpop.permute.xlu0 %61
    %v64 = vmul.f32 %v62, %v24
    %66 = vrot.lane.b32.xlu0 %v64, 32
    %v67 = vpop.permute.xlu0 %66
    %v69 = vadd.f32 %v24, %v67
    %v70 = vxor.u32 %v69, 2147483648
    %v71 = vmul.f32 %v70, 1.442695
    %v72 = vpow.pop %v71
    %v73 = vadd.f32 %v72, 1.0
    %v74 = vrcp.pop %v73
    %v75 = vmul.f32 %v73, %v74
    %v76 = vsub.f32 1.0, %v75
    %v77 = vmul.f32 %v74, %v76
    %v78 = vadd.f32 %v74, %v77
    %vm79 = vweird.f32 %v73
    %vm80 = vweird.f32 %v74
    %vm81 = vmor %vm79, %vm80
    %v82 = vsel %vm81, %v74, %v78
    %v83 = vand.u32 2147483647, %v73
    %vm84 = vcmp.eq.f32.partialorder %v83, 8.507059e+37
    %v85 = vand.u32 %v73, 2147483648
    %v86 = vor.u32 1.1754944e-38, %v85
    %v87 = vsel %vm84, %v86, %v82
    %v88 = vmul.f32 1.0, %v87
    %v89 = vtanh.pop %v69
    %91 = vrot.lane.b32.xlu0 %v89, 112
    %v92 = vpop.permute.xlu0 %91
    %v94 = vmul.f32 %v88, %v92
    %v95 = vtanh.pop %v94
    %97 = vrot.lane.b32.xlu0 %v95, 24
    %v98 = vpop.permute.xlu0 %97
    %v100 = vmul.f32 %v88, %v98
    %101 = vset.pattern.permute.xlu0 97
    %102 = vperm.xlu0 %101, %v24
    %v103 = vpop.permute.xlu0 %102
    %v105 = vmul.f32 %v103, %v24
    %107 = vrot.lane.b32.xlu0 %v105, 32
    %v108 = vpop.permute.xlu0 %107
    %v110 = vadd.f32 %v24, %v108
    %112 = vset.pattern.permute.xlu0 88
    %113 = vperm.xlu0 %112, %v100
    %v114 = vpop.permute.xlu0 %113
    %v116 = vmul.f32 %v114, %v23
    %117 = vset.pattern.permute.xlu0 89
    %118 = vperm.xlu0 %117, %v100
    %v119 = vpop.permute.xlu0 %118
    %v122 = vrot.slane %v23, 1
    %v124 = vmul.f32 %v119, %v122
    %125 = vset.pattern.permute.xlu0 90
    %126 = vperm.xlu0 %125, %v100
    %v127 = vpop.permute.xlu0 %126
    %v129 = vrot.slane %v23, 2
    %v131 = vmul.f32 %v127, %v129
    %132 = vset.pattern.permute.xlu0 91
    %133 = vperm.xlu0 %132, %v100
    %v134 = vpop.permute.xlu0 %133
    %v136 = vrot.slane %v23, 3
    %v138 = vmul.f32 %v134, %v136
    %139 = vset.pattern.permute.xlu0 92
    %140 = vperm.xlu0 %139, %v100
    %v141 = vpop.permute.xlu0 %140
    %v143 = vrot.slane %v23, 4
    %v145 = vmul.f32 %v141, %v143
    %v146 = vadd.f32 %v116, %v124
    %v147 = vadd.f32 %v131, %v138
    %v148 = vadd.f32 %v146, %v147
    %v149 = vadd.f32 %v148, %v145
    %151 = vrot.lane.b32.xlu0 %v149, 64
    %v152 = vpop.permute.xlu0 %151
    %v154 = vadd.f32 %v110, %v152
    %v155 = vxor.u32 %v154, 2147483648
    %v156 = vmul.f32 %v155, 1.442695
    %v157 = vpow.pop %v156
    %v158 = vadd.f32 %v157, 1.0
    %v159 = vrcp.pop %v158
    %v160 = vmul.f32 %v158, %v159
    %v161 = vsub.f32 1.0, %v160
    %v162 = vmul.f32 %v159, %v161
    %v163 = vadd.f32 %v159, %v162
    %vm164 = vweird.f32 %v158
    %vm165 = vweird.f32 %v159
    %vm166 = vmor %vm164, %vm165
    %v167 = vsel %vm166, %v159, %v163
    %v168 = vand.u32 2147483647, %v158
    %vm169 = vcmp.eq.f32.partialorder %v168, 8.507059e+37
    %v170 = vand.u32 %v158, 2147483648
    %v171 = vor.u32 1.1754944e-38, %v170
    %v172 = vsel %vm169, %v171, %v167
    %v173 = vmul.f32 1.0, %v172
    %v174 = vtanh.pop %v154
    %176 = vrot.lane.b32.xlu0 %v94, 8
    %v177 = vpop.permute.xlu0 %176
    %v179 = vmul.f32 %v173, %v177
    %181 = vrot.lane.b32.xlu0 %v174, 112
    %v182 = vpop.permute.xlu0 %181
    %v184 = vmul.f32 %v173, %v182
    %186 = vrot.lane.b32.xlu0 %v184, 8
    %v187 = vpop.permute.xlu0 %186
    %v189 = vadd.f32 %v179, %v187
    %v190 = vtanh.pop %v189
    %192 = vrot.lane.b32.xlu0 %v190, 16
    %v193 = vpop.permute.xlu0 %192
    %v195 = vmul.f32 %v173, %v193
    %196 = vset.pattern.permute.xlu0 98
    %197 = vperm.xlu0 %196, %v24
    %v198 = vpop.permute.xlu0 %197
    %v200 = vmul.f32 %v198, %v24
    %202 = vrot.lane.b32.xlu0 %v200, 32
    %v203 = vpop.permute.xlu0 %202
    %v205 = vadd.f32 %v24, %v203
    %207 = vset.pattern.permute.xlu0 88
    %208 = vperm.xlu0 %207, %v195
    %v209 = vpop.permute.xlu0 %208
    %v211 = vmul.f32 %v209, %v23
    %212 = vset.pattern.permute.xlu0 89
    %213 = vperm.xlu0 %212, %v195
    %v214 = vpop.permute.xlu0 %213
    %v216 = vmul.f32 %v214, %v122
    %217 = vset.pattern.permute.xlu0 90
    %218 = vperm.xlu0 %217, %v195
    %v219 = vpop.permute.xlu0 %218
    %v221 = vmul.f32 %v219, %v129
    %222 = vset.pattern.permute.xlu0 91
    %223 = vperm.xlu0 %222, %v195
    %v224 = vpop.permute.xlu0 %223
    %v226 = vmul.f32 %v224, %v136
    %227 = vset.pattern.permute.xlu0 92
    %228 = vperm.xlu0 %227, %v195
    %v229 = vpop.permute.xlu0 %228
    %v231 = vmul.f32 %v229, %v143
    %v232 = vadd.f32 %v211, %v216
    %v233 = vadd.f32 %v221, %v226
    %v234 = vadd.f32 %v232, %v233
    %v235 = vadd.f32 %v234, %v231
    %237 = vrot.lane.b32.xlu0 %v235, 64
    %v238 = vpop.permute.xlu0 %237
    %v240 = vadd.f32 %v205, %v238
    %v241 = vxor.u32 %v240, 2147483648
    %v242 = vmul.f32 %v241, 1.442695
    %v243 = vpow.pop %v242
    %v244 = vadd.f32 %v243, 1.0
    %v245 = vrcp.pop %v244
    %v246 = vmul.f32 %v244, %v245
    %v247 = vsub.f32 1.0, %v246
    %v248 = vmul.f32 %v245, %v247
    %v249 = vadd.f32 %v245, %v248
    %vm250 = vweird.f32 %v244
    %vm251 = vweird.f32 %v245
    %vm252 = vmor %vm250, %vm251
    %v253 = vsel %vm252, %v245, %v249
    %v254 = vand.u32 2147483647, %v244
    %vm255 = vcmp.eq.f32.partialorder %v254, 8.507059e+37
    %v256 = vand.u32 %v244, 2147483648
    %v257 = vor.u32 1.1754944e-38, %v256
    %v258 = vsel %vm255, %v257, %v253
    %v259 = vmul.f32 1.0, %v258
    %v260 = vtanh.pop %v240
    %v261 = vmul.f32 %v259, %v189
    %263 = vrot.lane.b32.xlu0 %v260, 112
    %v264 = vpop.permute.xlu0 %263
    %v266 = vmul.f32 %v259, %v264
    %268 = vrot.lane.b32.xlu0 %v266, 8
    %v269 = vpop.permute.xlu0 %268
    %v271 = vadd.f32 %v261, %v269
    %v272 = vtanh.pop %v271
    %274 = vrot.lane.b32.xlu0 %v272, 16
    %v275 = vpop.permute.xlu0 %274
    %v277 = vmul.f32 %v259, %v275
    %278 = vset.pattern.permute.xlu0 99
    %279 = vperm.xlu0 %278, %v24
    %v280 = vpop.permute.xlu0 %279
    %v282 = vmul.f32 %v280, %v24
    %284 = vrot.lane.b32.xlu0 %v282, 32
    %v285 = vpop.permute.xlu0 %284
    %v287 = vadd.f32 %v24, %v285
    %289 = vset.pattern.permute.xlu0 88
    %290 = vperm.xlu0 %289, %v277
    %v291 = vpop.permute.xlu0 %290
    %v293 = vmul.f32 %v291, %v23
    %294 = vset.pattern.permute.xlu0 89
    %295 = vperm.xlu0 %294, %v277
    %v296 = vpop.permute.xlu0 %295
    %v298 = vmul.f32 %v296, %v122
    %299 = vset.pattern.permute.xlu0 90
    %300 = vperm.xlu0 %299, %v277
    %v301 = vpop.permute.xlu0 %300
    %v303 = vmul.f32 %v301, %v129
    %304 = vset.pattern.permute.xlu0 91
    %305 = vperm.xlu0 %304, %v277
    %v306 = vpop.permute.xlu0 %305
    %v308 = vmul.f32 %v306, %v136
    %309 = vset.pattern.permute.xlu0 92
    %310 = vperm.xlu0 %309, %v277
    %v311 = vpop.permute.xlu0 %310
    %v313 = vmul.f32 %v311, %v143
    %v314 = vadd.f32 %v293, %v298
    %v315 = vadd.f32 %v303, %v308
    %v316 = vadd.f32 %v314, %v315
    %v317 = vadd.f32 %v316, %v313
    %319 = vrot.lane.b32.xlu0 %v317, 64
    %v320 = vpop.permute.xlu0 %319
    %v322 = vadd.f32 %v287, %v320
    %v323 = vxor.u32 %v322, 2147483648
    %v324 = vmul.f32 %v323, 1.442695
    %v325 = vpow.pop %v324
    %v326 = vadd.f32 %v325, 1.0
    %v327 = vrcp.pop %v326
    %v328 = vmul.f32 %v326, %v327
    %v329 = vsub.f32 1.0, %v328
    %v330 = vmul.f32 %v327, %v329
    %v331 = vadd.f32 %v327, %v330
    %vm332 = vweird.f32 %v326
    %vm333 = vweird.f32 %v327
    %vm334 = vmor %vm332, %vm333
    %v335 = vsel %vm334, %v327, %v331
    %v336 = vand.u32 2147483647, %v326
    %vm337 = vcmp.eq.f32.partialorder %v336, 8.507059e+37
    %v338 = vand.u32 %v326, 2147483648
    %v339 = vor.u32 1.1754944e-38, %v338
    %v340 = vsel %vm337, %v339, %v335
    %v341 = vmul.f32 1.0, %v340
    %v342 = vtanh.pop %v322
    %v343 = vmul.f32 %v341, %v271
    %345 = vrot.lane.b32.xlu0 %v342, 112
    %v346 = vpop.permute.xlu0 %345
    %v348 = vmul.f32 %v341, %v346
    %350 = vrot.lane.b32.xlu0 %v348, 8
    %v351 = vpop.permute.xlu0 %350
    %v353 = vadd.f32 %v343, %v351
    %v354 = vtanh.pop %v353
    %356 = vrot.lane.b32.xlu0 %v354, 16
    %v357 = vpop.permute.xlu0 %356
    %v359 = vmul.f32 %v341, %v357
    %360 = vset.pattern.permute.xlu0 100
    %361 = vperm.xlu0 %360, %v24
    %v362 = vpop.permute.xlu0 %361
    %v364 = vmul.f32 %v362, %v24
    %366 = vrot.lane.b32.xlu0 %v364, 32
    %v367 = vpop.permute.xlu0 %366
    %v369 = vadd.f32 %v24, %v367
    %371 = vset.pattern.permute.xlu0 88
    %372 = vperm.xlu0 %371, %v359
    %v373 = vpop.permute.xlu0 %372
    %v375 = vmul.f32 %v373, %v23
    %376 = vset.pattern.permute.xlu0 89
    %377 = vperm.xlu0 %376, %v359
    %v378 = vpop.permute.xlu0 %377
    %v380 = vmul.f32 %v378, %v122
    %381 = vset.pattern.permute.xlu0 90
    %382 = vperm.xlu0 %381, %v359
    %v383 = vpop.permute.xlu0 %382
    %v385 = vmul.f32 %v383, %v129
    %386 = vset.pattern.permute.xlu0 91
    %387 = vperm.xlu0 %386, %v359
    %v388 = vpop.permute.xlu0 %387
    %v390 = vmul.f32 %v388, %v136
    %391 = vset.pattern.permute.xlu0 92
    %392 = vperm.xlu0 %391, %v359
    %v393 = vpop.permute.xlu0 %392
    %v395 = vmul.f32 %v393, %v143
    %v396 = vadd.f32 %v375, %v380
    %v397 = vadd.f32 %v385, %v390
    %v398 = vadd.f32 %v396, %v397
    %v399 = vadd.f32 %v398, %v395
    %401 = vrot.lane.b32.xlu0 %v399, 64
    %v402 = vpop.permute.xlu0 %401
    %v404 = vadd.f32 %v369, %v402
    %v405 = vxor.u32 %v404, 2147483648
    %v406 = vmul.f32 %v405, 1.442695
    %v407 = vpow.pop %v406
    %v408 = vadd.f32 %v407, 1.0
    %v409 = vrcp.pop %v408
    %v410 = vmul.f32 %v408, %v409
    %v411 = vsub.f32 1.0, %v410
    %v412 = vmul.f32 %v409, %v411
    %v413 = vadd.f32 %v409, %v412
    %vm414 = vweird.f32 %v408
    %vm415 = vweird.f32 %v409
    %vm416 = vmor %vm414, %vm415
    %v417 = vsel %vm416, %v409, %v413
    %v418 = vand.u32 2147483647, %v408
    %vm419 = vcmp.eq.f32.partialorder %v418, 8.507059e+37
    %v420 = vand.u32 %v408, 2147483648
    %v421 = vor.u32 1.1754944e-38, %v420
    %v422 = vsel %vm419, %v421, %v417
    %v423 = vmul.f32 1.0, %v422
    %v424 = vtanh.pop %v404
    %v425 = vmul.f32 %v423, %v353
    %427 = vrot.lane.b32.xlu0 %v424, 112
    %v428 = vpop.permute.xlu0 %427
    %v430 = vmul.f32 %v423, %v428
    %432 = vrot.lane.b32.xlu0 %v430, 8
    %v433 = vpop.permute.xlu0 %432
    %v435 = vadd.f32 %v425, %v433
    %v436 = vtanh.pop %v435
    %438 = vrot.lane.b32.xlu0 %v436, 16
    %v439 = vpop.permute.xlu0 %438
    %v441 = vmul.f32 %v423, %v439
    %442 = vset.pattern.permute.xlu0 101
    %443 = vperm.xlu0 %442, %v24
    %v444 = vpop.permute.xlu0 %443
    %v446 = vmul.f32 %v444, %v24
    %448 = vrot.lane.b32.xlu0 %v446, 32
    %v449 = vpop.permute.xlu0 %448
    %v451 = vadd.f32 %v24, %v449
    %453 = vset.pattern.permute.xlu0 88
    %454 = vperm.xlu0 %453, %v441
    %v455 = vpop.permute.xlu0 %454
    %v457 = vmul.f32 %v455, %v23
    %458 = vset.pattern.permute.xlu0 89
    %459 = vperm.xlu0 %458, %v441
    %v460 = vpop.permute.xlu0 %459
    %v462 = vmul.f32 %v460, %v122
    %463 = vset.pattern.permute.xlu0 90
    %464 = vperm.xlu0 %463, %v441
    %v465 = vpop.permute.xlu0 %464
    %v467 = vmul.f32 %v465, %v129
    %468 = vset.pattern.permute.xlu0 91
    %469 = vperm.xlu0 %468, %v441
    %v470 = vpop.permute.xlu0 %469
    %v472 = vmul.f32 %v470, %v136
    %473 = vset.pattern.permute.xlu0 92
    %474 = vperm.xlu0 %473, %v441
    %v475 = vpop.permute.xlu0 %474
    %v477 = vmul.f32 %v475, %v143
    %v478 = vadd.f32 %v457, %v462
    %v479 = vadd.f32 %v467, %v472
    %v480 = vadd.f32 %v478, %v479
    %v481 = vadd.f32 %v480, %v477
    %483 = vrot.lane.b32.xlu0 %v481, 64
    %v484 = vpop.permute.xlu0 %483
    %v486 = vadd.f32 %v451, %v484
    %v487 = vxor.u32 %v486, 2147483648
    %v488 = vmul.f32 %v487, 1.442695
    %v489 = vpow.pop %v488
    %v490 = vadd.f32 %v489, 1.0
    %v491 = vrcp.pop %v490
    %v492 = vmul.f32 %v490, %v491
    %v493 = vsub.f32 1.0, %v492
    %v494 = vmul.f32 %v491, %v493
    %v495 = vadd.f32 %v491, %v494
    %vm496 = vweird.f32 %v490
    %vm497 = vweird.f32 %v491
    %vm498 = vmor %vm496, %vm497
    %v499 = vsel %vm498, %v491, %v495
    %v500 = vand.u32 2147483647, %v490
    %vm501 = vcmp.eq.f32.partialorder %v500, 8.507059e+37
    %v502 = vand.u32 %v490, 2147483648
    %v503 = vor.u32 1.1754944e-38, %v502
    %v504 = vsel %vm501, %v503, %v499
    %v505 = vmul.f32 1.0, %v504
    %v506 = vtanh.pop %v486
    %v507 = vmul.f32 %v505, %v435
    %509 = vrot.lane.b32.xlu0 %v506, 112
    %v510 = vpop.permute.xlu0 %509
    %v512 = vmul.f32 %v505, %v510
    %514 = vrot.lane.b32.xlu0 %v512, 8
    %v515 = vpop.permute.xlu0 %514
    %v517 = vadd.f32 %v507, %v515
    %v518 = vtanh.pop %v517
    %520 = vrot.lane.b32.xlu0 %v518, 16
    %v521 = vpop.permute.xlu0 %520
    %v523 = vmul.f32 %v505, %v521
    %524 = vset.pattern.permute.xlu0 102
    %525 = vperm.xlu0 %524, %v24
    %v526 = vpop.permute.xlu0 %525
    %v528 = vmul.f32 %v526, %v24
    %530 = vrot.lane.b32.xlu0 %v528, 32
    %v531 = vpop.permute.xlu0 %530
    %v533 = vadd.f32 %v24, %v531
    %535 = vset.pattern.permute.xlu0 88
    %536 = vperm.xlu0 %535, %v523
    %v537 = vpop.permute.xlu0 %536
    %v539 = vmul.f32 %v537, %v23
    %540 = vset.pattern.permute.xlu0 89
    %541 = vperm.xlu0 %540, %v523
    %v542 = vpop.permute.xlu0 %541
    %v544 = vmul.f32 %v542, %v122
    %545 = vset.pattern.permute.xlu0 90
    %546 = vperm.xlu0 %545, %v523
    %v547 = vpop.permute.xlu0 %546
    %v549 = vmul.f32 %v547, %v129
    %550 = vset.pattern.permute.xlu0 91
    %551 = vperm.xlu0 %550, %v523
    %v552 = vpop.permute.xlu0 %551
    %v554 = vmul.f32 %v552, %v136
    %555 = vset.pattern.permute.xlu0 92
    %556 = vperm.xlu0 %555, %v523
    %v557 = vpop.permute.xlu0 %556
    %v559 = vmul.f32 %v557, %v143
    %v560 = vadd.f32 %v539, %v544
    %v561 = vadd.f32 %v549, %v554
    %v562 = vadd.f32 %v560, %v561
    %v563 = vadd.f32 %v562, %v559
    %565 = vrot.lane.b32.xlu0 %v563, 64
    %v566 = vpop.permute.xlu0 %565
    %v568 = vadd.f32 %v533, %v566
    %v569 = vxor.u32 %v568, 2147483648
    %v570 = vmul.f32 %v569, 1.442695
    %v571 = vpow.pop %v570
    %v572 = vadd.f32 %v571, 1.0
    %v573 = vrcp.pop %v572
    %v574 = vmul.f32 %v572, %v573
    %v575 = vsub.f32 1.0, %v574
    %v576 = vmul.f32 %v573, %v575
    %v577 = vadd.f32 %v573, %v576
    %vm578 = vweird.f32 %v572
    %vm579 = vweird.f32 %v573
    %vm580 = vmor %vm578, %vm579
    %v581 = vsel %vm580, %v573, %v577
    %v582 = vand.u32 2147483647, %v572
    %vm583 = vcmp.eq.f32.partialorder %v582, 8.507059e+37
    %v584 = vand.u32 %v572, 2147483648
    %v585 = vor.u32 1.1754944e-38, %v584
    %v586 = vsel %vm583, %v585, %v581
    %v587 = vmul.f32 1.0, %v586
    %v588 = vtanh.pop %v568
    %v589 = vmul.f32 %v587, %v517
    %591 = vrot.lane.b32.xlu0 %v588, 112
    %v592 = vpop.permute.xlu0 %591
    %v594 = vmul.f32 %v587, %v592
    %596 = vrot.lane.b32.xlu0 %v594, 8
    %v597 = vpop.permute.xlu0 %596
    %v599 = vadd.f32 %v589, %v597
    %v600 = vtanh.pop %v599
    %602 = vrot.lane.b32.xlu0 %v600, 16
    %v603 = vpop.permute.xlu0 %602
    %v605 = vmul.f32 %v587, %v603
    %607 = vrot.lane.b32.xlu0 %v25, 24
    %v608 = vpop.permute.xlu0 %607
    %v610 = vmul.f32 %v605, %v608
    %612 = vrot.lane.b32.xlu0 %v610, 40
    %v613 = vpop.permute.xlu0 %612
    %vm615 = vcmask 57344
    %v616 = vsel %vm615, %v613, 0.0
    %617 = vadd.xlane.f32.xlu0 %v616
    %v618 = vpop.xlane.xlu0 %617
    %v619 = vmul.f32 %v618, %v31
    %v620 = vadd.f32 %v619, 0.0
    %621 = vset.pattern.permute.xlu0 103
    %622 = vperm.xlu0 %621, %v24
    %v623 = vpop.permute.xlu0 %622
    %v625 = vmul.f32 %v623, %v24
    %627 = vrot.lane.b32.xlu0 %v625, 32
    %v628 = vpop.permute.xlu0 %627
    %v630 = vadd.f32 %v24, %v628
    %632 = vset.pattern.permute.xlu0 88
    %633 = vperm.xlu0 %632, %v605
    %v634 = vpop.permute.xlu0 %633
    %v636 = vmul.f32 %v634, %v23
    %637 = vset.pattern.permute.xlu0 89
    %638 = vperm.xlu0 %637, %v605
    %v639 = vpop.permute.xlu0 %638
    %v641 = vmul.f32 %v639, %v122
    %642 = vset.pattern.permute.xlu0 90
    %643 = vperm.xlu0 %642, %v605
    %v644 = vpop.permute.xlu0 %643
    %v646 = vmul.f32 %v644, %v129
    %647 = vset.pattern.permute.xlu0 91
    %648 = vperm.xlu0 %647, %v605
    %v649 = vpop.permute.xlu0 %648
    %v651 = vmul.f32 %v649, %v136
    %652 = vset.pattern.permute.xlu0 92
    %653 = vperm.xlu0 %652, %v605
    %v654 = vpop.permute.xlu0 %653
    %v656 = vmul.f32 %v654, %v143
    %v657 = vadd.f32 %v636, %v641
    %v658 = vadd.f32 %v646, %v651
    %v659 = vadd.f32 %v657, %v658
    %v660 = vadd.f32 %v659, %v656
    %662 = vrot.lane.b32.xlu0 %v660, 64
    %v663 = vpop.permute.xlu0 %662
    %v665 = vadd.f32 %v630, %v663
    %v666 = vxor.u32 %v665, 2147483648
    %v667 = vmul.f32 %v666, 1.442695
    %v668 = vpow.pop %v667
    %v669 = vadd.f32 %v668, 1.0
    %v670 = vrcp.pop %v669
    %v671 = vmul.f32 %v669, %v670
    %v672 = vsub.f32 1.0, %v671
    %v673 = vmul.f32 %v670, %v672
    %v674 = vadd.f32 %v670, %v673
    %vm675 = vweird.f32 %v669
    %vm676 = vweird.f32 %v670
    %vm677 = vmor %vm675, %vm676
    %v678 = vsel %vm677, %v670, %v674
    %v679 = vand.u32 2147483647, %v669
    %vm680 = vcmp.eq.f32.partialorder %v679, 8.507059e+37
    %v681 = vand.u32 %v669, 2147483648
    %v682 = vor.u32 1.1754944e-38, %v681
    %v683 = vsel %vm680, %v682, %v678
    %v684 = vmul.f32 1.0, %v683
    %v685 = vtanh.pop %v665
    %v686 = vmul.f32 %v684, %v599
    %688 = vrot.lane.b32.xlu0 %v685, 112
    %v689 = vpop.permute.xlu0 %688
    %v691 = vmul.f32 %v684, %v689
    %693 = vrot.lane.b32.xlu0 %v691, 8
    %v694 = vpop.permute.xlu0 %693
    %v696 = vadd.f32 %v686, %v694
    %v697 = vtanh.pop %v696
    %699 = vrot.lane.b32.xlu0 %v697, 16
    %v700 = vpop.permute.xlu0 %699
    %v702 = vmul.f32 %v684, %v700
    %v703 = vmul.f32 %v702, %v608
    %705 = vrot.lane.b32.xlu0 %v703, 40
    %v706 = vpop.permute.xlu0 %705
    %v708 = vsel %vm615, %v706, 0.0
    %709 = vadd.xlane.f32.xlu0 %v708
    %v710 = vpop.xlane.xlu0 %709
    %v711 = vmul.f32 %v710, %v34
    %v712 = vadd.f32 %v620, %v711
    %713 = vset.pattern.permute.xlu0 104
    %714 = vperm.xlu0 %713, %v24
    %v715 = vpop.permute.xlu0 %714
    %v717 = vmul.f32 %v715, %v24
    %719 = vrot.lane.b32.xlu0 %v717, 32
    %v720 = vpop.permute.xlu0 %719
    %v722 = vadd.f32 %v24, %v720
    %724 = vset.pattern.permute.xlu0 88
    %725 = vperm.xlu0 %724, %v702
    %v726 = vpop.permute.xlu0 %725
    %v728 = vmul.f32 %v726, %v23
    %729 = vset.pattern.permute.xlu0 89
    %730 = vperm.xlu0 %729, %v702
    %v731 = vpop.permute.xlu0 %730
    %v733 = vmul.f32 %v731, %v122
    %734 = vset.pattern.permute.xlu0 90
    %735 = vperm.xlu0 %734, %v702
    %v736 = vpop.permute.xlu0 %735
    %v738 = vmul.f32 %v736, %v129
    %739 = vset.pattern.permute.xlu0 91
    %740 = vperm.xlu0 %739, %v702
    %v741 = vpop.permute.xlu0 %740
    %v743 = vmul.f32 %v741, %v136
    %744 = vset.pattern.permute.xlu0 92
    %745 = vperm.xlu0 %744, %v702
    %v746 = vpop.permute.xlu0 %745
    %v748 = vmul.f32 %v746, %v143
    %v749 = vadd.f32 %v728, %v733
    %v750 = vadd.f32 %v738, %v743
    %v751 = vadd.f32 %v749, %v750
    %v752 = vadd.f32 %v751, %v748
    %754 = vrot.lane.b32.xlu0 %v752, 64
    %v755 = vpop.permute.xlu0 %754
    %v757 = vadd.f32 %v722, %v755
    %v758 = vxor.u32 %v757, 2147483648
    %v759 = vmul.f32 %v758, 1.442695
    %v760 = vpow.pop %v759
    %v761 = vadd.f32 %v760, 1.0
    %v762 = vrcp.pop %v761
    %v763 = vmul.f32 %v761, %v762
    %v764 = vsub.f32 1.0, %v763
    %v765 = vmul.f32 %v762, %v764
    %v766 = vadd.f32 %v762, %v765
    %vm767 = vweird.f32 %v761
    %vm768 = vweird.f32 %v762
    %vm769 = vmor %vm767, %vm768
    %v770 = vsel %vm769, %v762, %v766
    %v771 = vand.u32 2147483647, %v761
    %vm772 = vcmp.eq.f32.partialorder %v771, 8.507059e+37
    %v773 = vand.u32 %v761, 2147483648
    %v774 = vor.u32 1.1754944e-38, %v773
    %v775 = vsel %vm772, %v774, %v770
    %v776 = vmul.f32 1.0, %v775
    %v777 = vtanh.pop %v757
    %v778 = vmul.f32 %v776, %v696
    %780 = vrot.lane.b32.xlu0 %v777, 112
    %v781 = vpop.permute.xlu0 %780
    %v783 = vmul.f32 %v776, %v781
    %785 = vrot.lane.b32.xlu0 %v783, 8
    %v786 = vpop.permute.xlu0 %785
    %v788 = vadd.f32 %v778, %v786
    %v789 = vtanh.pop %v788
    %791 = vrot.lane.b32.xlu0 %v789, 16
    %v792 = vpop.permute.xlu0 %791
    %v794 = vmul.f32 %v776, %v792
    %v795 = vmul.f32 %v794, %v608
    %797 = vrot.lane.b32.xlu0 %v795, 40
    %v798 = vpop.permute.xlu0 %797
    %v800 = vsel %vm615, %v798, 0.0
    %801 = vadd.xlane.f32.xlu0 %v800
    %v802 = vpop.xlane.xlu0 %801
    %v803 = vmul.f32 %v802, %v37
    %v804 = vadd.f32 %v712, %v803
    %805 = vset.pattern.permute.xlu0 105
    %806 = vperm.xlu0 %805, %v24
    %v807 = vpop.permute.xlu0 %806
    %v809 = vmul.f32 %v807, %v24
    %811 = vrot.lane.b32.xlu0 %v809, 32
    %v812 = vpop.permute.xlu0 %811
    %v814 = vadd.f32 %v24, %v812
    %816 = vset.pattern.permute.xlu0 88
    %817 = vperm.xlu0 %816, %v794
    %v818 = vpop.permute.xlu0 %817
    %v820 = vmul.f32 %v818, %v23
    %821 = vset.pattern.permute.xlu0 89
    %822 = vperm.xlu0 %821, %v794
    %v823 = vpop.permute.xlu0 %822
    %v825 = vmul.f32 %v823, %v122
    %826 = vset.pattern.permute.xlu0 90
    %827 = vperm.xlu0 %826, %v794
    %v828 = vpop.permute.xlu0 %827
    %v830 = vmul.f32 %v828, %v129
    %831 = vset.pattern.permute.xlu0 91
    %832 = vperm.xlu0 %831, %v794
    %v833 = vpop.permute.xlu0 %832
    %v835 = vmul.f32 %v833, %v136
    %836 = vset.pattern.permute.xlu0 92
    %837 = vperm.xlu0 %836, %v794
    %v838 = vpop.permute.xlu0 %837
    %v840 = vmul.f32 %v838, %v143
    %v841 = vadd.f32 %v820, %v825
    %v842 = vadd.f32 %v830, %v835
    %v843 = vadd.f32 %v841, %v842
    %v844 = vadd.f32 %v843, %v840
    %846 = vrot.lane.b32.xlu0 %v844, 64
    %v847 = vpop.permute.xlu0 %846
    %v849 = vadd.f32 %v814, %v847
    %v850 = vxor.u32 %v849, 2147483648
    %v851 = vmul.f32 %v850, 1.442695
    %v852 = vpow.pop %v851
    %v853 = vadd.f32 %v852, 1.0
    %v854 = vrcp.pop %v853
    %v855 = vmul.f32 %v853, %v854
    %v856 = vsub.f32 1.0, %v855
    %v857 = vmul.f32 %v854, %v856
    %v858 = vadd.f32 %v854, %v857
    %vm859 = vweird.f32 %v853
    %vm860 = vweird.f32 %v854
    %vm861 = vmor %vm859, %vm860
    %v862 = vsel %vm861, %v854, %v858
    %v863 = vand.u32 2147483647, %v853
    %vm864 = vcmp.eq.f32.partialorder %v863, 8.507059e+37
    %v865 = vand.u32 %v853, 2147483648
    %v866 = vor.u32 1.1754944e-38, %v865
    %v867 = vsel %vm864, %v866, %v862
    %v868 = vmul.f32 1.0, %v867
    %v869 = vtanh.pop %v849
    %v870 = vmul.f32 %v868, %v788
    %872 = vrot.lane.b32.xlu0 %v869, 112
    %v873 = vpop.permute.xlu0 %872
    %v875 = vmul.f32 %v868, %v873
    %877 = vrot.lane.b32.xlu0 %v875, 8
    %v878 = vpop.permute.xlu0 %877
    %v880 = vadd.f32 %v870, %v878
    %v881 = vtanh.pop %v880
    %883 = vrot.lane.b32.xlu0 %v881, 16
    %v884 = vpop.permute.xlu0 %883
    %v886 = vmul.f32 %v868, %v884
    %v887 = vmul.f32 %v886, %v608
    %889 = vrot.lane.b32.xlu0 %v887, 40
    %v890 = vpop.permute.xlu0 %889
    %v892 = vsel %vm615, %v890, 0.0
    %893 = vadd.xlane.f32.xlu0 %v892
    %v894 = vpop.xlane.xlu0 %893
    %v895 = vmul.f32 %v894, %v40
    %v896 = vadd.f32 %v804, %v895
    %897 = vset.pattern.permute.xlu0 106
    %898 = vperm.xlu0 %897, %v24
    %v899 = vpop.permute.xlu0 %898
    %v901 = vmul.f32 %v899, %v24
    %903 = vrot.lane.b32.xlu0 %v901, 32
    %v904 = vpop.permute.xlu0 %903
    %v906 = vadd.f32 %v24, %v904
    %908 = vset.pattern.permute.xlu0 88
    %909 = vperm.xlu0 %908, %v886
    %v910 = vpop.permute.xlu0 %909
    %v912 = vmul.f32 %v910, %v23
    %913 = vset.pattern.permute.xlu0 89
    %914 = vperm.xlu0 %913, %v886
    %v915 = vpop.permute.xlu0 %914
    %v917 = vmul.f32 %v915, %v122
    %918 = vset.pattern.permute.xlu0 90
    %919 = vperm.xlu0 %918, %v886
    %v920 = vpop.permute.xlu0 %919
    %v922 = vmul.f32 %v920, %v129
    %923 = vset.pattern.permute.xlu0 91
    %924 = vperm.xlu0 %923, %v886
    %v925 = vpop.permute.xlu0 %924
    %v927 = vmul.f32 %v925, %v136
    %928 = vset.pattern.permute.xlu0 92
    %929 = vperm.xlu0 %928, %v886
    %v930 = vpop.permute.xlu0 %929
    %v932 = vmul.f32 %v930, %v143
    %v933 = vadd.f32 %v912, %v917
    %v934 = vadd.f32 %v922, %v927
    %v935 = vadd.f32 %v933, %v934
    %v936 = vadd.f32 %v935, %v932
    %938 = vrot.lane.b32.xlu0 %v936, 64
    %v939 = vpop.permute.xlu0 %938
    %v941 = vadd.f32 %v906, %v939
    %v942 = vxor.u32 %v941, 2147483648
    %v943 = vmul.f32 %v942, 1.442695
    %v944 = vpow.pop %v943
    %v945 = vadd.f32 %v944, 1.0
    %v946 = vrcp.pop %v945
    %v947 = vmul.f32 %v945, %v946
    %v948 = vsub.f32 1.0, %v947
    %v949 = vmul.f32 %v946, %v948
    %v950 = vadd.f32 %v946, %v949
    %vm951 = vweird.f32 %v945
    %vm952 = vweird.f32 %v946
    %vm953 = vmor %vm951, %vm952
    %v954 = vsel %vm953, %v946, %v950
    %v955 = vand.u32 2147483647, %v945
    %vm956 = vcmp.eq.f32.partialorder %v955, 8.507059e+37
    %v957 = vand.u32 %v945, 2147483648
    %v958 = vor.u32 1.1754944e-38, %v957
    %v959 = vsel %vm956, %v958, %v954
    %v960 = vmul.f32 1.0, %v959
    %v961 = vtanh.pop %v941
    %v962 = vmul.f32 %v960, %v880
    %964 = vrot.lane.b32.xlu0 %v961, 112
    %v965 = vpop.permute.xlu0 %964
    %v967 = vmul.f32 %v960, %v965
    %969 = vrot.lane.b32.xlu0 %v967, 8
    %v970 = vpop.permute.xlu0 %969
    %v972 = vadd.f32 %v962, %v970
    %v973 = vtanh.pop %v972
    %975 = vrot.lane.b32.xlu0 %v973, 16
    %v976 = vpop.permute.xlu0 %975
    %v978 = vmul.f32 %v960, %v976
    %v979 = vmul.f32 %v978, %v608
    %981 = vrot.lane.b32.xlu0 %v979, 40
    %v982 = vpop.permute.xlu0 %981
    %v984 = vsel %vm615, %v982, 0.0
    %985 = vadd.xlane.f32.xlu0 %v984
    %v986 = vpop.xlane.xlu0 %985
    %v987 = vmul.f32 %v986, %v43
    %v988 = vadd.f32 %v896, %v987
    %989 = vset.pattern.permute.xlu0 107
    %990 = vperm.xlu0 %989, %v24
    %v991 = vpop.permute.xlu0 %990
    %v993 = vmul.f32 %v991, %v24
    %995 = vrot.lane.b32.xlu0 %v993, 32
    %v996 = vpop.permute.xlu0 %995
    %v998 = vadd.f32 %v24, %v996
    %1000 = vset.pattern.permute.xlu0 88
    %1001 = vperm.xlu0 %1000, %v978
    %v1002 = vpop.permute.xlu0 %1001
    %v1004 = vmul.f32 %v1002, %v23
    %1005 = vset.pattern.permute.xlu0 89
    %1006 = vperm.xlu0 %1005, %v978
    %v1007 = vpop.permute.xlu0 %1006
    %v1009 = vmul.f32 %v1007, %v122
    %1010 = vset.pattern.permute.xlu0 90
    %1011 = vperm.xlu0 %1010, %v978
    %v1012 = vpop.permute.xlu0 %1011
    %v1014 = vmul.f32 %v1012, %v129
    %1015 = vset.pattern.permute.xlu0 91
    %1016 = vperm.xlu0 %1015, %v978
    %v1017 = vpop.permute.xlu0 %1016
    %v1019 = vmul.f32 %v1017, %v136
    %1020 = vset.pattern.permute.xlu0 92
    %1021 = vperm.xlu0 %1020, %v978
    %v1022 = vpop.permute.xlu0 %1021
    %v1024 = vmul.f32 %v1022, %v143
    %v1025 = vadd.f32 %v1004, %v1009
    %v1026 = vadd.f32 %v1014, %v1019
    %v1027 = vadd.f32 %v1025, %v1026
    %v1028 = vadd.f32 %v1027, %v1024
    %1030 = vrot.lane.b32.xlu0 %v1028, 64
    %v1031 = vpop.permute.xlu0 %1030
    %v1033 = vadd.f32 %v998, %v1031
    %v1034 = vxor.u32 %v1033, 2147483648
    %v1035 = vmul.f32 %v1034, 1.442695
    %v1036 = vpow.pop %v1035
    %v1037 = vadd.f32 %v1036, 1.0
    %v1038 = vrcp.pop %v1037
    %v1039 = vmul.f32 %v1037, %v1038
    %v1040 = vsub.f32 1.0, %v1039
    %v1041 = vmul.f32 %v1038, %v1040
    %v1042 = vadd.f32 %v1038, %v1041
    %vm1043 = vweird.f32 %v1037
    %vm1044 = vweird.f32 %v1038
    %vm1045 = vmor %vm1043, %vm1044
    %v1046 = vsel %vm1045, %v1038, %v1042
    %v1047 = vand.u32 2147483647, %v1037
    %vm1048 = vcmp.eq.f32.partialorder %v1047, 8.507059e+37
    %v1049 = vand.u32 %v1037, 2147483648
    %v1050 = vor.u32 1.1754944e-38, %v1049
    %v1051 = vsel %vm1048, %v1050, %v1046
    %v1052 = vmul.f32 1.0, %v1051
    %v1053 = vtanh.pop %v1033
    %v1054 = vmul.f32 %v1052, %v972
    %1056 = vrot.lane.b32.xlu0 %v1053, 112
    %v1057 = vpop.permute.xlu0 %1056
    %v1059 = vmul.f32 %v1052, %v1057
    %1061 = vrot.lane.b32.xlu0 %v1059, 8
    %v1062 = vpop.permute.xlu0 %1061
    %v1064 = vadd.f32 %v1054, %v1062
    %v1065 = vtanh.pop %v1064
    %1067 = vrot.lane.b32.xlu0 %v1065, 16
    %v1068 = vpop.permute.xlu0 %1067
    %v1070 = vmul.f32 %v1052, %v1068
    %v1071 = vmul.f32 %v1070, %v608
    %1073 = vrot.lane.b32.xlu0 %v1071, 40
    %v1074 = vpop.permute.xlu0 %1073
    %v1076 = vsel %vm615, %v1074, 0.0
    %1077 = vadd.xlane.f32.xlu0 %v1076
    %v1078 = vpop.xlane.xlu0 %1077
    %v1079 = vmul.f32 %v1078, %v46
    %v1080 = vadd.f32 %v988, %v1079
    %1081 = vset.pattern.permute.xlu0 108
    %1082 = vperm.xlu0 %1081, %v24
    %v1083 = vpop.permute.xlu0 %1082
    %v1085 = vmul.f32 %v1083, %v24
    %1087 = vrot.lane.b32.xlu0 %v1085, 32
    %v1088 = vpop.permute.xlu0 %1087
    %v1090 = vadd.f32 %v24, %v1088
    %1092 = vset.pattern.permute.xlu0 88
    %1093 = vperm.xlu0 %1092, %v1070
    %v1094 = vpop.permute.xlu0 %1093
    %v1096 = vmul.f32 %v1094, %v23
    %1097 = vset.pattern.permute.xlu0 89
    %1098 = vperm.xlu0 %1097, %v1070
    %v1099 = vpop.permute.xlu0 %1098
    %v1101 = vmul.f32 %v1099, %v122
    %1102 = vset.pattern.permute.xlu0 90
    %1103 = vperm.xlu0 %1102, %v1070
    %v1104 = vpop.permute.xlu0 %1103
    %v1106 = vmul.f32 %v1104, %v129
    %1107 = vset.pattern.permute.xlu0 91
    %1108 = vperm.xlu0 %1107, %v1070
    %v1109 = vpop.permute.xlu0 %1108
    %v1111 = vmul.f32 %v1109, %v136
    %1112 = vset.pattern.permute.xlu0 92
    %1113 = vperm.xlu0 %1112, %v1070
    %v1114 = vpop.permute.xlu0 %1113
    %v1116 = vmul.f32 %v1114, %v143
    %v1117 = vadd.f32 %v1096, %v1101
    %v1118 = vadd.f32 %v1106, %v1111
    %v1119 = vadd.f32 %v1117, %v1118
    %v1120 = vadd.f32 %v1119, %v1116
    %1122 = vrot.lane.b32.xlu0 %v1120, 64
    %v1123 = vpop.permute.xlu0 %1122
    %v1125 = vadd.f32 %v1090, %v1123
    %v1126 = vxor.u32 %v1125, 2147483648
    %v1127 = vmul.f32 %v1126, 1.442695
    %v1128 = vpow.pop %v1127
    %v1129 = vadd.f32 %v1128, 1.0
    %v1130 = vrcp.pop %v1129
    %v1131 = vmul.f32 %v1129, %v1130
    %v1132 = vsub.f32 1.0, %v1131
    %v1133 = vmul.f32 %v1130, %v1132
    %v1134 = vadd.f32 %v1130, %v1133
    %vm1135 = vweird.f32 %v1129
    %vm1136 = vweird.f32 %v1130
    %vm1137 = vmor %vm1135, %vm1136
    %v1138 = vsel %vm1137, %v1130, %v1134
    %v1139 = vand.u32 2147483647, %v1129
    %vm1140 = vcmp.eq.f32.partialorder %v1139, 8.507059e+37
    %v1141 = vand.u32 %v1129, 2147483648
    %v1142 = vor.u32 1.1754944e-38, %v1141
    %v1143 = vsel %vm1140, %v1142, %v1138
    %v1144 = vmul.f32 1.0, %v1143
    %v1145 = vtanh.pop %v1125
    %v1146 = vmul.f32 %v1144, %v1064
    %1148 = vrot.lane.b32.xlu0 %v1145, 112
    %v1149 = vpop.permute.xlu0 %1148
    %v1151 = vmul.f32 %v1144, %v1149
    %1153 = vrot.lane.b32.xlu0 %v1151, 8
    %v1154 = vpop.permute.xlu0 %1153
    %v1156 = vadd.f32 %v1146, %v1154
    %v1157 = vtanh.pop %v1156
    %1159 = vrot.lane.b32.xlu0 %v1157, 16
    %v1160 = vpop.permute.xlu0 %1159
    %v1162 = vmul.f32 %v1144, %v1160
    %v1163 = vmul.f32 %v1162, %v608
    %1165 = vrot.lane.b32.xlu0 %v1163, 40
    %v1166 = vpop.permute.xlu0 %1165
    %v1168 = vsel %vm615, %v1166, 0.0
    %1169 = vadd.xlane.f32.xlu0 %v1168
    %v1170 = vpop.xlane.xlu0 %1169
    %v1171 = vmul.f32 %v1170, %v49
    %v1172 = vadd.f32 %v1080, %v1171
    %1173 = vset.pattern.permute.xlu0 109
    %1174 = vperm.xlu0 %1173, %v24
    %v1175 = vpop.permute.xlu0 %1174
    %v1177 = vmul.f32 %v1175, %v24
    %1179 = vrot.lane.b32.xlu0 %v1177, 32
    %v1180 = vpop.permute.xlu0 %1179
    %v1182 = vadd.f32 %v24, %v1180
    %1184 = vset.pattern.permute.xlu0 88
    %1185 = vperm.xlu0 %1184, %v1162
    %v1186 = vpop.permute.xlu0 %1185
    %v1188 = vmul.f32 %v1186, %v23
    %1189 = vset.pattern.permute.xlu0 89
    %1190 = vperm.xlu0 %1189, %v1162
    %v1191 = vpop.permute.xlu0 %1190
    %v1193 = vmul.f32 %v1191, %v122
    %1194 = vset.pattern.permute.xlu0 90
    %1195 = vperm.xlu0 %1194, %v1162
    %v1196 = vpop.permute.xlu0 %1195
    %v1198 = vmul.f32 %v1196, %v129
    %1199 = vset.pattern.permute.xlu0 91
    %1200 = vperm.xlu0 %1199, %v1162
    %v1201 = vpop.permute.xlu0 %1200
    %v1203 = vmul.f32 %v1201, %v136
    %1204 = vset.pattern.permute.xlu0 92
    %1205 = vperm.xlu0 %1204, %v1162
    %v1206 = vpop.permute.xlu0 %1205
    %v1208 = vmul.f32 %v1206, %v143
    %v1209 = vadd.f32 %v1188, %v1193
    %v1210 = vadd.f32 %v1198, %v1203
    %v1211 = vadd.f32 %v1209, %v1210
    %v1212 = vadd.f32 %v1211, %v1208
    %1214 = vrot.lane.b32.xlu0 %v1212, 64
    %v1215 = vpop.permute.xlu0 %1214
    %v1217 = vadd.f32 %v1182, %v1215
    %v1218 = vxor.u32 %v1217, 2147483648
    %v1219 = vmul.f32 %v1218, 1.442695
    %v1220 = vpow.pop %v1219
    %v1221 = vadd.f32 %v1220, 1.0
    %v1222 = vrcp.pop %v1221
    %v1223 = vmul.f32 %v1221, %v1222
    %v1224 = vsub.f32 1.0, %v1223
    %v1225 = vmul.f32 %v1222, %v1224
    %v1226 = vadd.f32 %v1222, %v1225
    %vm1227 = vweird.f32 %v1221
    %vm1228 = vweird.f32 %v1222
    %vm1229 = vmor %vm1227, %vm1228
    %v1230 = vsel %vm1229, %v1222, %v1226
    %v1231 = vand.u32 2147483647, %v1221
    %vm1232 = vcmp.eq.f32.partialorder %v1231, 8.507059e+37
    %v1233 = vand.u32 %v1221, 2147483648
    %v1234 = vor.u32 1.1754944e-38, %v1233
    %v1235 = vsel %vm1232, %v1234, %v1230
    %v1236 = vmul.f32 1.0, %v1235
    %v1237 = vtanh.pop %v1217
    %v1238 = vmul.f32 %v1236, %v1156
    %1240 = vrot.lane.b32.xlu0 %v1237, 112
    %v1241 = vpop.permute.xlu0 %1240
    %v1243 = vmul.f32 %v1236, %v1241
    %1245 = vrot.lane.b32.xlu0 %v1243, 8
    %v1246 = vpop.permute.xlu0 %1245
    %v1248 = vadd.f32 %v1238, %v1246
    %v1249 = vtanh.pop %v1248
    %1251 = vrot.lane.b32.xlu0 %v1249, 16
    %v1252 = vpop.permute.xlu0 %1251
    %v1254 = vmul.f32 %v1236, %v1252
    %v1255 = vmul.f32 %v1254, %v608
    %1257 = vrot.lane.b32.xlu0 %v1255, 40
    %v1258 = vpop.permute.xlu0 %1257
    %v1260 = vsel %vm615, %v1258, 0.0
    %1261 = vadd.xlane.f32.xlu0 %v1260
    %v1262 = vpop.xlane.xlu0 %1261
    %v1263 = vmul.f32 %v1262, %v52
    %v1264 = vadd.f32 %v1172, %v1263
    %1265 = vset.pattern.permute.xlu0 110
    %1266 = vperm.xlu0 %1265, %v24
    %v1267 = vpop.permute.xlu0 %1266
    %v1269 = vmul.f32 %v1267, %v24
    %1271 = vrot.lane.b32.xlu0 %v1269, 32
    %v1272 = vpop.permute.xlu0 %1271
    %v1274 = vadd.f32 %v24, %v1272
    %1276 = vset.pattern.permute.xlu0 88
    %1277 = vperm.xlu0 %1276, %v1254
    %v1278 = vpop.permute.xlu0 %1277
    %v1280 = vmul.f32 %v1278, %v23
    %1281 = vset.pattern.permute.xlu0 89
    %1282 = vperm.xlu0 %1281, %v1254
    %v1283 = vpop.permute.xlu0 %1282
    %v1285 = vmul.f32 %v1283, %v122
    %1286 = vset.pattern.permute.xlu0 90
    %1287 = vperm.xlu0 %1286, %v1254
    %v1288 = vpop.permute.xlu0 %1287
    %v1290 = vmul.f32 %v1288, %v129
    %1291 = vset.pattern.permute.xlu0 91
    %1292 = vperm.xlu0 %1291, %v1254
    %v1293 = vpop.permute.xlu0 %1292
    %v1295 = vmul.f32 %v1293, %v136
    %1296 = vset.pattern.permute.xlu0 92
    %1297 = vperm.xlu0 %1296, %v1254
    %v1298 = vpop.permute.xlu0 %1297
    %v1300 = vmul.f32 %v1298, %v143
    %v1301 = vadd.f32 %v1280, %v1285
    %v1302 = vadd.f32 %v1290, %v1295
    %v1303 = vadd.f32 %v1301, %v1302
    %v1304 = vadd.f32 %v1303, %v1300
    %1306 = vrot.lane.b32.xlu0 %v1304, 64
    %v1307 = vpop.permute.xlu0 %1306
    %v1309 = vadd.f32 %v1274, %v1307
    %v1310 = vxor.u32 %v1309, 2147483648
    %v1311 = vmul.f32 %v1310, 1.442695
    %v1312 = vpow.pop %v1311
    %v1313 = vadd.f32 %v1312, 1.0
    %v1314 = vrcp.pop %v1313
    %v1315 = vmul.f32 %v1313, %v1314
    %v1316 = vsub.f32 1.0, %v1315
    %v1317 = vmul.f32 %v1314, %v1316
    %v1318 = vadd.f32 %v1314, %v1317
    %vm1319 = vweird.f32 %v1313
    %vm1320 = vweird.f32 %v1314
    %vm1321 = vmor %vm1319, %vm1320
    %v1322 = vsel %vm1321, %v1314, %v1318
    %v1323 = vand.u32 2147483647, %v1313
    %vm1324 = vcmp.eq.f32.partialorder %v1323, 8.507059e+37
    %v1325 = vand.u32 %v1313, 2147483648
    %v1326 = vor.u32 1.1754944e-38, %v1325
    %v1327 = vsel %vm1324, %v1326, %v1322
    %v1328 = vmul.f32 1.0, %v1327
    %v1329 = vtanh.pop %v1309
    %v1330 = vmul.f32 %v1328, %v1248
    %1332 = vrot.lane.b32.xlu0 %v1329, 112
    %v1333 = vpop.permute.xlu0 %1332
    %v1335 = vmul.f32 %v1328, %v1333
    %1337 = vrot.lane.b32.xlu0 %v1335, 8
    %v1338 = vpop.permute.xlu0 %1337
    %v1340 = vadd.f32 %v1330, %v1338
    %v1341 = vtanh.pop %v1340
    %1343 = vrot.lane.b32.xlu0 %v1341, 16
    %v1344 = vpop.permute.xlu0 %1343
    %v1346 = vmul.f32 %v1328, %v1344
    %v1347 = vmul.f32 %v1346, %v608
    %1349 = vrot.lane.b32.xlu0 %v1347, 40
    %v1350 = vpop.permute.xlu0 %1349
    %v1352 = vsel %vm615, %v1350, 0.0
    %1353 = vadd.xlane.f32.xlu0 %v1352
    %v1354 = vpop.xlane.xlu0 %1353
    %v1355 = vmul.f32 %v1354, %v55
    %v1356 = vadd.f32 %v1264, %v1355
    %1357 = vset.pattern.permute.xlu0 111
    %1358 = vperm.xlu0 %1357, %v24
    %v1359 = vpop.permute.xlu0 %1358
    %v1361 = vmul.f32 %v1359, %v24
    %1363 = vrot.lane.b32.xlu0 %v1361, 32
    %v1364 = vpop.permute.xlu0 %1363
    %v1366 = vadd.f32 %v24, %v1364
    %1368 = vset.pattern.permute.xlu0 88
    %1369 = vperm.xlu0 %1368, %v1346
    %v1370 = vpop.permute.xlu0 %1369
    %v1372 = vmul.f32 %v1370, %v23
    %1373 = vset.pattern.permute.xlu0 89
    %1374 = vperm.xlu0 %1373, %v1346
    %v1375 = vpop.permute.xlu0 %1374
    %v1377 = vmul.f32 %v1375, %v122
    %1378 = vset.pattern.permute.xlu0 90
    %1379 = vperm.xlu0 %1378, %v1346
    %v1380 = vpop.permute.xlu0 %1379
    %v1382 = vmul.f32 %v1380, %v129
    %1383 = vset.pattern.permute.xlu0 91
    %1384 = vperm.xlu0 %1383, %v1346
    %v1385 = vpop.permute.xlu0 %1384
    %v1387 = vmul.f32 %v1385, %v136
    %1388 = vset.pattern.permute.xlu0 92
    %1389 = vperm.xlu0 %1388, %v1346
    %v1390 = vpop.permute.xlu0 %1389
    %v1392 = vmul.f32 %v1390, %v143
    %v1393 = vadd.f32 %v1372, %v1377
    %v1394 = vadd.f32 %v1382, %v1387
    %v1395 = vadd.f32 %v1393, %v1394
    %v1396 = vadd.f32 %v1395, %v1392
    %1398 = vrot.lane.b32.xlu0 %v1396, 64
    %v1399 = vpop.permute.xlu0 %1398
    %v1401 = vadd.f32 %v1366, %v1399
    %v1402 = vxor.u32 %v1401, 2147483648
    %v1403 = vmul.f32 %v1402, 1.442695
    %v1404 = vpow.pop %v1403
    %v1405 = vadd.f32 %v1404, 1.0
    %v1406 = vrcp.pop %v1405
    %v1407 = vmul.f32 %v1405, %v1406
    %v1408 = vsub.f32 1.0, %v1407
    %v1409 = vmul.f32 %v1406, %v1408
    %v1410 = vadd.f32 %v1406, %v1409
    %vm1411 = vweird.f32 %v1405
    %vm1412 = vweird.f32 %v1406
    %vm1413 = vmor %vm1411, %vm1412
    %v1414 = vsel %vm1413, %v1406, %v1410
    %v1415 = vand.u32 2147483647, %v1405
    %vm1416 = vcmp.eq.f32.partialorder %v1415, 8.507059e+37
    %v1417 = vand.u32 %v1405, 2147483648
    %v1418 = vor.u32 1.1754944e-38, %v1417
    %v1419 = vsel %vm1416, %v1418, %v1414
    %v1420 = vmul.f32 1.0, %v1419
    %v1421 = vtanh.pop %v1401
    %v1422 = vmul.f32 %v1420, %v1340
    %1424 = vrot.lane.b32.xlu0 %v1421, 112
    %v1425 = vpop.permute.xlu0 %1424
    %v1427 = vmul.f32 %v1420, %v1425
    %1429 = vrot.lane.b32.xlu0 %v1427, 8
    %v1430 = vpop.permute.xlu0 %1429
    %v1432 = vadd.f32 %v1422, %v1430
    %v1433 = vtanh.pop %v1432
    %1435 = vrot.lane.b32.xlu0 %v1433, 16
    %v1436 = vpop.permute.xlu0 %1435
    %v1438 = vmul.f32 %v1420, %v1436
    %v1439 = vmul.f32 %v1438, %v608
    %1441 = vrot.lane.b32.xlu0 %v1439, 40
    %v1442 = vpop.permute.xlu0 %1441
    %v1444 = vsel %vm615, %v1442, 0.0
    %1445 = vadd.xlane.f32.xlu0 %v1444
    %v1446 = vpop.xlane.xlu0 %1445
    %v1447 = vmul.f32 %v1446, %v58
    %v1448 = vadd.f32 %v1356, %v1447
    %1450 = vset.pattern.permute.xlu0 64
    %1451 = vperm.xlu0 %1450, %v26
    %v1452 = vpop.permute.xlu0 %1451
    %v1454 = vadd.f32 %v1448, %v1452
    %v1455 = vxor.u32 %v1454, 2147483648
    %v1456 = vmul.f32 %v1455, 1.442695
    %v1457 = vpow.pop %v1456
    %v1458 = vadd.f32 %v1457, 1.0
    %v1459 = vrcp.pop %v1458
    %v1460 = vmul.f32 %v1458, %v1459
    %v1461 = vsub.f32 1.0, %v1460
    %v1462 = vmul.f32 %v1459, %v1461
    %v1463 = vadd.f32 %v1459, %v1462
    %vm1464 = vweird.f32 %v1458
    %vm1465 = vweird.f32 %v1459
    %vm1466 = vmor %vm1464, %vm1465
    %v1467 = vsel %vm1466, %v1459, %v1463
    %v1468 = vand.u32 2147483647, %v1458
    %vm1469 = vcmp.eq.f32.partialorder %v1468, 8.507059e+37
    %v1470 = vand.u32 %v1458, 2147483648
    %v1471 = vor.u32 1.1754944e-38, %v1470
    %v1472 = vsel %vm1469, %v1471, %v1467
    %v1473 = vmul.f32 1.0, %v1472
    %vm1474 = vcmask 73728
    %1475 = vst.msk [vmem:[#allocation5] sm:$0x1] %vm1474, %v1473
    // Predicated region
    $region10: #{tpu_custom_call.1} parent=1 // pred_check
      _
    $region11: #{tpu_custom_call.1} parent=1 // pred_check_branch
      %1477 = sbr.rel (0) target = $region13
    $region12: #{tpu_custom_call.1} parent=1 // pred_region
      %1479 = vsyncadd [#allocation4], 0
      %s1481 = sshll.u32 [#allocation5], 4
      %s1482 = int_to_ptr.vmem [resolvable:$true] %s1481
      %s1483 = sshll.u32 %s1, 4
      %s1484 = int_to_ptr.hbm [resolvable:$true] %s1483
      %1486 = dma.vmem_to_hbm [thread:$0]  %s1482, 16, %s1484, [#allocation4]
    $region13: #{tpu_custom_call.1} parent=1 // pred_fallthru
      _
    // Predicated region
    $region14: #{tpu_custom_call.1} parent=1 // pred_check
      _
    $region15: #{tpu_custom_call.1} parent=1 // pred_check_branch
      %1488 = sbr.rel (0) target = $region17
    $region16: #{tpu_custom_call.1} parent=1 // pred_region
      %1490 = dma.done [#allocation4], 16
    $region17: #{tpu_custom_call.1} parent=1 // pred_fallthru
      _
    %1491 = vsyncpa [#allocation3], 1
    %1492 = vsyncpa [#allocation4], 1

</llo_original>
